<compile_context>
chip_gen: v7x
topology: tpu7x:2x2x1
jax: 0.10.0
libtpu: 0.0.40
codegen_flags: <defaults>
</compile_context>

<pallas_src>
import functools

import jax
import jax.numpy as jnp
from jax.experimental import pallas as pl
from jax.experimental.pallas import tpu as pltpu

# ----------------------------- model dims ----------------------------------
IN_DIM = 784           # args.input_size = [784]
IN_PAD = 896           # 7 * 128 lanes
HIDDEN = 128           # args.gen_hiddens
Z_SIZE = 32            # args.z_size
HEAD = 2 * HIDDEN      # fused mu|var head width (mu @ lanes 0:32, var @ 128:160)
W_MID_W = HIDDEN + HEAD + HIDDEN + HIDDEN          # 640
B_LEN = HIDDEN + HIDDEN + HEAD + HIDDEN + HIDDEN + IN_PAD  # 1664


def _round_up(x, m):
    return (x + m - 1) // m * m


def _softplus_torch(x):
    # PyTorch nn.Softplus(beta=1, threshold=20)
    return jnp.where(x > 20.0, x, jnp.log(1.0 + jnp.exp(jnp.minimum(x, 20.0))))


# ------------------------------- kernel -------------------------------------
def vae_kernel(x_ref, eps_ref, w_in_ref, w_mid_ref, w_out_ref, b_ref,
               xmean_ref, latent_ref):
    f32 = jnp.float32
    bf16 = jnp.bfloat16

    # static, 128-aligned views into the packed weight / bias slabs
    we2 = w_mid_ref[:, 0:128]                  # (128, 128)  encoder layer 2
    whd = w_mid_ref[:, 128:384]                # (128, 256)  fused mu|var head
    wd1 = w_mid_ref[:, 384:512]                # (128, 128)  decoder layer 1 (rows 32: zero)
    wd2 = w_mid_ref[:, 512:640]                # (128, 128)  decoder layer 2

    be1 = b_ref[:, 0:128]
    be2 = b_ref[:, 128:256]
    bhd = b_ref[:, 256:512]
    bd1 = b_ref[:, 512:640]
    bd2 = b_ref[:, 640:768]
    bout = b_ref[:, 768:1664]                  # (1, 896)

    x = x_ref[...]                             # (TM, 896) f32, cols 784: are zero
    eps = eps_ref[...]                         # (TM, 128) f32, lanes 32: are zero

    # ---- encoder q_z_nn (dropout = identity) ----
    h = jnp.dot(x.astype(bf16), w_in_ref[...], preferred_element_type=f32) + be1
    h = jnp.maximum(h, 0.0)
    h = jnp.dot(h.astype(bf16), we2, preferred_element_type=f32) + be2
    h = jnp.maximum(h, 0.0)

    # ---- fused q_z_mean / q_z_var head: one (128, 256) MXU push ----
    head = jnp.dot(h.astype(bf16), whd, preferred_element_type=f32) + bhd
    mu_blk = head[:, 0:128]                    # mu in lanes 0:32, rest exactly 0
    var_blk = _softplus_torch(head[:, 128:256])  # var in lanes 0:32 (pad lanes = log 2,
    #                                             harmless: eps pad = 0 and wd1 pad rows = 0)

    # ---- reparameterize: z = eps * sqrt(var) + mu ----
    z_blk = eps * jnp.sqrt(var_blk) + mu_blk   # lanes 32: stay 0

    # ---- decoder p_x_nn ----
    d = jnp.dot(z_blk.astype(bf16), wd1, preferred_element_type=f32) + bd1
    d = jnp.maximum(d, 0.0)
    d = jnp.dot(d.astype(bf16), wd2, preferred_element_type=f32) + bd2
    d = jnp.maximum(d, 0.0)

    # ---- p_x_mean: Linear -> Sigmoid ----
    logits = jnp.dot(d.astype(bf16), w_out_ref[...], preferred_element_type=f32) + bout
    xmean_ref[...] = pl.reciprocal(1.0 + jnp.exp(-logits), approx=True)

    # single lane-dense latent slab: [mu | var | z], each 128-lane aligned
    latent_ref[:, 0:128] = mu_blk
    latent_ref[:, 128:256] = var_blk
    latent_ref[:, 256:384] = z_blk


# ------------------------------- wrapper -------------------------------------
@functools.partial(jax.jit, static_argnames=("block_m",))
def vae_forward(x, eps, packed, *, block_m=128):
    """x: (B, 784) f32, eps: (B, 32) f32, packed = pack_params(params)."""
    w_in, w_mid, w_out, biases = packed
    B = x.shape[0]
    tm = min(block_m, _round_up(max(B, 1), 8))
    bp = _round_up(B, tm)

    xp = jnp.zeros((bp, IN_PAD), jnp.float32).at[:B, :IN_DIM].set(x)
    ep = jnp.zeros((bp, HIDDEN), jnp.float32).at[:B, :Z_SIZE].set(eps)

    grid = (bp // tm,)
    x_mean_p, latent = pl.pallas_call(
        vae_kernel,
        out_shape=(
            jax.ShapeDtypeStruct((bp, IN_PAD), jnp.float32),  # x_mean (padded)
            jax.ShapeDtypeStruct((bp, 3 * 128), jnp.float32),  # [mu | var | z]
        ),
        grid_spec=pltpu.PrefetchScalarGridSpec(
            num_scalar_prefetch=0,
            grid=grid,
            in_specs=[
                pl.BlockSpec((tm, IN_PAD), lambda i: (i, 0)),     # x tile
                pl.BlockSpec((tm, HIDDEN), lambda i: (i, 0)),     # eps tile
                pl.BlockSpec(w_in.shape, lambda i: (0, 0)),       # weights: loaded once,
                pl.BlockSpec(w_mid.shape, lambda i: (0, 0)),      # block index constant so
                pl.BlockSpec(w_out.shape, lambda i: (0, 0)),      # no re-DMA across steps
                pl.BlockSpec(biases.shape, lambda i: (0, 0)),
            ],
            out_specs=(
                pl.BlockSpec((tm, IN_PAD), lambda i: (i, 0)),
                pl.BlockSpec((tm, 3 * 128), lambda i: (i, 0)),
            ),
        ),
        compiler_params=pltpu.CompilerParams(
            dimension_semantics=("parallel",)),
    )(xp, ep, w_in, w_mid, w_out, biases)

    x_mean = x_mean_p[:B, :IN_DIM]
    mu = latent[:B, 0:Z_SIZE]
    var = latent[:B, 128:128 + Z_SIZE]
    z = latent[:B, 256:256 + Z_SIZE]
    log_det_j = jnp.zeros((1,), jnp.float32)
    # forward() returns (x_mean, z_mu, z_var, log_det_j, z_0, z_k); z_0 = z_k.
    return x_mean, mu, var, log_det_j, z, z


# ----------------------------- params ----------------------------------------
def _linear_params(key, fan_in, fan_out):
    # PyTorch-style uniform(-1/sqrt(fan_in), +1/sqrt(fan_in)) init.
    kw, kb = jax.random.split(key)
    bound = 1.0 / jnp.sqrt(jnp.float32(fan_in))
    w = jax.random.uniform(kw, (fan_in, fan_out), jnp.float32, -bound, bound)
    b = jax.random.uniform(kb, (fan_out,), jnp.float32, -bound, bound)
    return w, b


def make_params(key):
    keys = jax.random.split(key, 7)
    we1, be1 = _linear_params(keys[0], IN_DIM, HIDDEN)     # encoder layer 1
    we2, be2 = _linear_params(keys[1], HIDDEN, HIDDEN)     # encoder layer 2
    wmu, bmu = _linear_params(keys[2], HIDDEN, Z_SIZE)     # q_z_mean
    wvar, bvar = _linear_params(keys[3], HIDDEN, Z_SIZE)   # q_z_var (pre-softplus)
    wd1, bd1 = _linear_params(keys[4], Z_SIZE, HIDDEN)     # decoder layer 1
    wd2, bd2 = _linear_params(keys[5], HIDDEN, HIDDEN)     # decoder layer 2
    wout, bout = _linear_params(keys[6], HIDDEN, IN_DIM)   # p_x_mean linear
    return (we1, be1, we2, be2, wmu, bmu, wvar, bvar,
            wd1, bd1, wd2, bd2, wout, bout)


def pack_params(params):
    """Pack 14 tensors into 3 bf16 weight slabs + 1 f32 bias slab."""
    (we1, be1, we2, be2, wmu, bmu, wvar, bvar,
     wd1, bd1, wd2, bd2, wout, bout) = params
    bf16 = jnp.bfloat16

    w_in = jnp.zeros((IN_PAD, HIDDEN), jnp.float32).at[:IN_DIM].set(we1).astype(bf16)

    whd = jnp.zeros((HIDDEN, HEAD), jnp.float32)
    whd = whd.at[:, 0:Z_SIZE].set(wmu).at[:, HIDDEN:HIDDEN + Z_SIZE].set(wvar)
    wd1p = jnp.zeros((HIDDEN, HIDDEN), jnp.float32).at[:Z_SIZE].set(wd1)
    w_mid = jnp.concatenate([we2, whd, wd1p, wd2], axis=1).astype(bf16)  # (128, 640)

    w_out = jnp.zeros((HIDDEN, IN_PAD), jnp.float32).at[:, :IN_DIM].set(wout).astype(bf16)

    bhd = jnp.zeros((HEAD,), jnp.float32)
    bhd = bhd.at[0:Z_SIZE].set(bmu).at[HIDDEN:HIDDEN + Z_SIZE].set(bvar)
    bout_p = jnp.zeros((IN_PAD,), jnp.float32).at[:IN_DIM].set(bout)
    biases = jnp.concatenate([be1, be2, bhd, bd1, bd2, bout_p]).reshape(1, B_LEN)

    return w_in, w_mid, w_out, biases


# ------------------------- pure-JAX reference --------------------------------
def vae_reference(x, eps, params):
    (we1, be1, we2, be2, wmu, bmu, wvar, bvar,
     wd1, bd1, wd2, bd2, wout, bout) = params
    bf16 = jnp.bfloat16

    def lin(a, w, b):
        return jnp.dot(a.astype(bf16), w.astype(bf16),
                       preferred_element_type=jnp.float32) + b

    h = jnp.maximum(lin(x, we1, be1), 0.0)
    h = jnp.maximum(lin(h, we2, be2), 0.0)
    mu = lin(h, wmu, bmu)
    var = _softplus_torch(lin(h, wvar, bvar))
    z = eps * jnp.sqrt(var) + mu
    d = jnp.maximum(lin(z, wd1, bd1), 0.0)
    d = jnp.maximum(lin(d, wd2, bd2), 0.0)
    x_mean = 1.0 / (1.0 + jnp.exp(-lin(d, wout, bout)))
    return x_mean, mu, var, z


# --------------------------------- main ---------------------------------------
if __name__ == "__main__":
    root = jax.random.PRNGKey(0)
    k_params, k_x, k_eps = jax.random.split(root, 3)

    BATCH = 16
    params = make_params(k_params)
    packed = pack_params(params)
    # binary input (permuted-MNIST style), reparam noise supplied explicitly
    x = (jax.random.uniform(k_x, (BATCH, IN_DIM)) < 0.5).astype(jnp.float32)
    eps = jax.random.normal(k_eps, (BATCH, Z_SIZE), jnp.float32)

    # block_m=8 so the small demo batch still exercises a 2-step parallel grid;
    # real workloads use the default block_m=128.
    out = vae_forward(x, eps, packed, block_m=8)
    out = jax.block_until_ready(out)
    x_mean, mu, var, log_det_j, z0, zk = out

    # shape / range checks
    assert x_mean.shape == (BATCH, IN_DIM)
    assert mu.shape == (BATCH, Z_SIZE) and var.shape == (BATCH, Z_SIZE)
    assert z0.shape == (BATCH, Z_SIZE) and log_det_j.shape == (1,)
    assert bool(jnp.all(var > 0.0))
    assert bool(jnp.all((x_mean >= 0.0) & (x_mean <= 1.0)))

    # numerical check against the pure-JAX reference (same bf16 weights)
    r_xm, r_mu, r_var, r_z = vae_reference(x, eps, params)
    for got, ref in ((x_mean, r_xm), (mu, r_mu), (var, r_var), (z0, r_z)):
        err = float(jnp.max(jnp.abs(got - ref)))
        assert err < 2e-2, f"max abs err {err}"

    print("KERNEL_OK")
</pallas_src>

<mosaic_0001>
module attributes {stable_mosaic.version = 11 : i64} {
  func.func @vae_kernel(%arg0: i32, %arg1: memref<8x896xf32, #tpu.memory_space<vmem>>, %arg2: memref<8x128xf32, #tpu.memory_space<vmem>>, %arg3: memref<896x128xbf16, #tpu.memory_space<vmem>>, %arg4: memref<128x640xbf16, #tpu.memory_space<vmem>>, %arg5: memref<128x896xbf16, #tpu.memory_space<vmem>>, %arg6: memref<1x1664xf32, #tpu.memory_space<vmem>>, %arg7: memref<8x896xf32, #tpu.memory_space<vmem>>, %arg8: memref<8x384xf32, #tpu.memory_space<vmem>>) attributes {dimension_semantics = [#tpu.dimension_semantics<parallel>], iteration_bounds = array<i64: 2>, scalar_prefetch = 0 : i64, scratch_operands = 0 : i64, tpu.core_type = #tpu.core_type<tc>, window_params = [{transform_indices = @transform_0, window_bounds = array<i64: 8, 896>}, {transform_indices = @transform_1, window_bounds = array<i64: 8, 128>}, {pipeline_mode = #tpu.pipeline_mode<synchronous>, transform_indices = @transform_2, window_bounds = array<i64: 896, 128>}, {pipeline_mode = #tpu.pipeline_mode<synchronous>, transform_indices = @transform_3, window_bounds = array<i64: 128, 640>}, {pipeline_mode = #tpu.pipeline_mode<synchronous>, transform_indices = @transform_4, window_bounds = array<i64: 128, 896>}, {pipeline_mode = #tpu.pipeline_mode<synchronous>, transform_indices = @transform_5, window_bounds = array<i64: 1, 1664>}, {transform_indices = @transform_6, window_bounds = array<i64: 8, 896>}, {transform_indices = @transform_7, window_bounds = array<i64: 8, 384>}]} {
    %c0 = arith.constant 0 : index
    %c0_0 = arith.constant 0 : index
    %0 = vector.load %arg4[%c0, %c0_0] : memref<128x640xbf16, #tpu.memory_space<vmem>>, vector<128x128xbf16>
    %c0_1 = arith.constant 0 : index
    %c128 = arith.constant 128 : index
    %1 = vector.load %arg4[%c0_1, %c128] : memref<128x640xbf16, #tpu.memory_space<vmem>>, vector<128x256xbf16>
    %c0_2 = arith.constant 0 : index
    %c384 = arith.constant 384 : index
    %2 = vector.load %arg4[%c0_2, %c384] : memref<128x640xbf16, #tpu.memory_space<vmem>>, vector<128x128xbf16>
    %c0_3 = arith.constant 0 : index
    %c512 = arith.constant 512 : index
    %3 = vector.load %arg4[%c0_3, %c512] : memref<128x640xbf16, #tpu.memory_space<vmem>>, vector<128x128xbf16>
    %c0_4 = arith.constant 0 : index
    %c0_5 = arith.constant 0 : index
    %4 = vector.load %arg6[%c0_4, %c0_5] : memref<1x1664xf32, #tpu.memory_space<vmem>>, vector<1x128xf32>
    %c0_6 = arith.constant 0 : index
    %c128_7 = arith.constant 128 : index
    %5 = vector.load %arg6[%c0_6, %c128_7] : memref<1x1664xf32, #tpu.memory_space<vmem>>, vector<1x128xf32>
    %c0_8 = arith.constant 0 : index
    %c256 = arith.constant 256 : index
    %6 = vector.load %arg6[%c0_8, %c256] : memref<1x1664xf32, #tpu.memory_space<vmem>>, vector<1x256xf32>
    %c0_9 = arith.constant 0 : index
    %c512_10 = arith.constant 512 : index
    %7 = vector.load %arg6[%c0_9, %c512_10] : memref<1x1664xf32, #tpu.memory_space<vmem>>, vector<1x128xf32>
    %c0_11 = arith.constant 0 : index
    %c640 = arith.constant 640 : index
    %8 = vector.load %arg6[%c0_11, %c640] : memref<1x1664xf32, #tpu.memory_space<vmem>>, vector<1x128xf32>
    %c0_12 = arith.constant 0 : index
    %c768 = arith.constant 768 : index
    %9 = vector.load %arg6[%c0_12, %c768] : memref<1x1664xf32, #tpu.memory_space<vmem>>, vector<1x896xf32>
    %c0_13 = arith.constant 0 : index
    %c0_14 = arith.constant 0 : index
    %10 = vector.load %arg1[%c0_13, %c0_14] : memref<8x896xf32, #tpu.memory_space<vmem>>, vector<8x896xf32>
    %c0_15 = arith.constant 0 : index
    %c0_16 = arith.constant 0 : index
    %11 = vector.load %arg2[%c0_15, %c0_16] : memref<8x128xf32, #tpu.memory_space<vmem>>, vector<8x128xf32>
    %12 = arith.truncf %10 : vector<8x896xf32> to vector<8x896xbf16>
    %c0_17 = arith.constant 0 : index
    %c0_18 = arith.constant 0 : index
    %13 = vector.load %arg3[%c0_17, %c0_18] : memref<896x128xbf16, #tpu.memory_space<vmem>>, vector<896x128xbf16>
    %cst = arith.constant dense<0.000000e+00> : vector<8x128xf32>
    %14 = tpu.matmul %12, %13, %cst {dimension_numbers = #tpu.dot_dimension_numbers<[1], [0], [0], [1], [0, 0, 1, 1], [], []>} : vector<8x896xbf16>, vector<896x128xbf16>, vector<8x128xf32> -> vector<8x128xf32>
    %15 = vector.broadcast %4 : vector<1x128xf32> to vector<8x128xf32>
    %16 = arith.addf %14, %15 : vector<8x128xf32>
    %cst_19 = arith.constant 0.000000e+00 : f32
    %17 = vector.broadcast %cst_19 : f32 to vector<8x128xf32>
    %18 = arith.maximumf %16, %17 : vector<8x128xf32>
    %19 = arith.truncf %18 : vector<8x128xf32> to vector<8x128xbf16>
    %cst_20 = arith.constant dense<0.000000e+00> : vector<8x128xf32>
    %20 = tpu.matmul %19, %0, %cst_20 {dimension_numbers = #tpu.dot_dimension_numbers<[1], [0], [0], [1], [0, 0, 1, 1], [], []>} : vector<8x128xbf16>, vector<128x128xbf16>, vector<8x128xf32> -> vector<8x128xf32>
    %21 = vector.broadcast %5 : vector<1x128xf32> to vector<8x128xf32>
    %22 = arith.addf %20, %21 : vector<8x128xf32>
    %cst_21 = arith.constant 0.000000e+00 : f32
    %23 = vector.broadcast %cst_21 : f32 to vector<8x128xf32>
    %24 = arith.maximumf %22, %23 : vector<8x128xf32>
    %25 = arith.truncf %24 : vector<8x128xf32> to vector<8x128xbf16>
    %cst_22 = arith.constant dense<0.000000e+00> : vector<8x256xf32>
    %26 = tpu.matmul %25, %1, %cst_22 {dimension_numbers = #tpu.dot_dimension_numbers<[1], [0], [0], [1], [0, 0, 1, 1], [], []>} : vector<8x128xbf16>, vector<128x256xbf16>, vector<8x256xf32> -> vector<8x256xf32>
    %27 = vector.broadcast %6 : vector<1x256xf32> to vector<8x256xf32>
    %28 = arith.addf %26, %27 : vector<8x256xf32>
    %29 = vector.extract_strided_slice %28 {offsets = [0, 0], sizes = [8, 128], strides = [1, 1]} : vector<8x256xf32> to vector<8x128xf32>
    %30 = vector.extract_strided_slice %28 {offsets = [0, 128], sizes = [8, 128], strides = [1, 1]} : vector<8x256xf32> to vector<8x128xf32>
    %cst_23 = arith.constant 2.000000e+01 : f32
    %31 = vector.broadcast %cst_23 : f32 to vector<8x128xf32>
    %32 = arith.cmpf ogt, %30, %31 : vector<8x128xf32>
    %cst_24 = arith.constant 2.000000e+01 : f32
    %33 = vector.broadcast %cst_24 : f32 to vector<8x128xf32>
    %34 = arith.minimumf %30, %33 : vector<8x128xf32>
    %35 = math.exp %34 : vector<8x128xf32>
    %cst_25 = arith.constant 1.000000e+00 : f32
    %36 = vector.broadcast %cst_25 : f32 to vector<8x128xf32>
    %37 = arith.addf %36, %35 : vector<8x128xf32>
    %38 = math.log %37 : vector<8x128xf32>
    %39 = arith.select %32, %30, %38 : vector<8x128xi1>, vector<8x128xf32>
    %40 = math.sqrt %39 : vector<8x128xf32>
    %41 = arith.mulf %11, %40 : vector<8x128xf32>
    %42 = arith.addf %41, %29 : vector<8x128xf32>
    %43 = arith.truncf %42 : vector<8x128xf32> to vector<8x128xbf16>
    %cst_26 = arith.constant dense<0.000000e+00> : vector<8x128xf32>
    %44 = tpu.matmul %43, %2, %cst_26 {dimension_numbers = #tpu.dot_dimension_numbers<[1], [0], [0], [1], [0, 0, 1, 1], [], []>} : vector<8x128xbf16>, vector<128x128xbf16>, vector<8x128xf32> -> vector<8x128xf32>
    %45 = vector.broadcast %7 : vector<1x128xf32> to vector<8x128xf32>
    %46 = arith.addf %44, %45 : vector<8x128xf32>
    %cst_27 = arith.constant 0.000000e+00 : f32
    %47 = vector.broadcast %cst_27 : f32 to vector<8x128xf32>
    %48 = arith.maximumf %46, %47 : vector<8x128xf32>
    %49 = arith.truncf %48 : vector<8x128xf32> to vector<8x128xbf16>
    %cst_28 = arith.constant dense<0.000000e+00> : vector<8x128xf32>
    %50 = tpu.matmul %49, %3, %cst_28 {dimension_numbers = #tpu.dot_dimension_numbers<[1], [0], [0], [1], [0, 0, 1, 1], [], []>} : vector<8x128xbf16>, vector<128x128xbf16>, vector<8x128xf32> -> vector<8x128xf32>
    %51 = vector.broadcast %8 : vector<1x128xf32> to vector<8x128xf32>
    %52 = arith.addf %50, %51 : vector<8x128xf32>
    %cst_29 = arith.constant 0.000000e+00 : f32
    %53 = vector.broadcast %cst_29 : f32 to vector<8x128xf32>
    %54 = arith.maximumf %52, %53 : vector<8x128xf32>
    %55 = arith.truncf %54 : vector<8x128xf32> to vector<8x128xbf16>
    %c0_30 = arith.constant 0 : index
    %c0_31 = arith.constant 0 : index
    %56 = vector.load %arg5[%c0_30, %c0_31] : memref<128x896xbf16, #tpu.memory_space<vmem>>, vector<128x896xbf16>
    %cst_32 = arith.constant dense<0.000000e+00> : vector<8x896xf32>
    %57 = tpu.matmul %55, %56, %cst_32 {dimension_numbers = #tpu.dot_dimension_numbers<[1], [0], [0], [1], [0, 0, 1, 1], [], []>} : vector<8x128xbf16>, vector<128x896xbf16>, vector<8x896xf32> -> vector<8x896xf32>
    %58 = vector.broadcast %9 : vector<1x896xf32> to vector<8x896xf32>
    %59 = arith.addf %57, %58 : vector<8x896xf32>
    %cst_33 = arith.constant 0.000000e+00 : f32
    %60 = vector.broadcast %cst_33 : f32 to vector<8x896xf32>
    %61 = arith.subf %60, %59 : vector<8x896xf32>
    %62 = math.exp %61 : vector<8x896xf32>
    %cst_34 = arith.constant 1.000000e+00 : f32
    %63 = vector.broadcast %cst_34 : f32 to vector<8x896xf32>
    %64 = arith.addf %63, %62 : vector<8x896xf32>
    %65 = tpu.reciprocal %64 {approx = true} : vector<8x896xf32> -> vector<8x896xf32>
    %c0_35 = arith.constant 0 : index
    %c0_36 = arith.constant 0 : index
    %66 = vector.load %arg7[%c0_35, %c0_36] : memref<8x896xf32, #tpu.memory_space<vmem>>, vector<8x896xf32>
    tpu.vector_store %arg7[%c0_35, %c0_36], %65 {strides = array<i32>} : memref<8x896xf32, #tpu.memory_space<vmem>>, vector<8x896xf32>,
    %c0_37 = arith.constant 0 : index
    %c0_38 = arith.constant 0 : index
    %67 = vector.load %arg8[%c0_37, %c0_38] : memref<8x384xf32, #tpu.memory_space<vmem>>, vector<8x128xf32>
    tpu.vector_store %arg8[%c0_37, %c0_38], %29 {strides = array<i32>} : memref<8x384xf32, #tpu.memory_space<vmem>>, vector<8x128xf32>,
    %c0_39 = arith.constant 0 : index
    %c128_40 = arith.constant 128 : index
    %68 = vector.load %arg8[%c0_39, %c128_40] : memref<8x384xf32, #tpu.memory_space<vmem>>, vector<8x128xf32>
    tpu.vector_store %arg8[%c0_39, %c128_40], %39 {strides = array<i32>} : memref<8x384xf32, #tpu.memory_space<vmem>>, vector<8x128xf32>,
    %c0_41 = arith.constant 0 : index
    %c256_42 = arith.constant 256 : index
    %69 = vector.load %arg8[%c0_41, %c256_42] : memref<8x384xf32, #tpu.memory_space<vmem>>, vector<8x128xf32>
    tpu.vector_store %arg8[%c0_41, %c256_42], %42 {strides = array<i32>} : memref<8x384xf32, #tpu.memory_space<vmem>>, vector<8x128xf32>,
    return
  }
  func.func @transform_0(%arg0: i32) -> (i32, i32) {
    %c0_i32 = arith.constant 0 : i32
    %c0_i32_0 = arith.constant 0 : i32
    return %arg0, %c0_i32 : i32, i32
  }
  func.func @transform_1(%arg0: i32) -> (i32, i32) {
    %c0_i32 = arith.constant 0 : i32
    %c0_i32_0 = arith.constant 0 : i32
    return %arg0, %c0_i32 : i32, i32
  }
  func.func @transform_2(%arg0: i32) -> (i32, i32) {
    %c0_i32 = arith.constant 0 : i32
    %c0_i32_0 = arith.constant 0 : i32
    %c0_i32_1 = arith.constant 0 : i32
    return %c0_i32, %c0_i32_0 : i32, i32
  }
  func.func @transform_3(%arg0: i32) -> (i32, i32) {
    %c0_i32 = arith.constant 0 : i32
    %c0_i32_0 = arith.constant 0 : i32
    %c0_i32_1 = arith.constant 0 : i32
    return %c0_i32, %c0_i32_0 : i32, i32
  }
  func.func @transform_4(%arg0: i32) -> (i32, i32) {
    %c0_i32 = arith.constant 0 : i32
    %c0_i32_0 = arith.constant 0 : i32
    %c0_i32_1 = arith.constant 0 : i32
    return %c0_i32, %c0_i32_0 : i32, i32
  }
  func.func @transform_5(%arg0: i32) -> (i32, i32) {
    %c0_i32 = arith.constant 0 : i32
    %c0_i32_0 = arith.constant 0 : i32
    %c0_i32_1 = arith.constant 0 : i32
    return %c0_i32, %c0_i32_0 : i32, i32
  }
  func.func @transform_6(%arg0: i32) -> (i32, i32) {
    %c0_i32 = arith.constant 0 : i32
    %c0_i32_0 = arith.constant 0 : i32
    return %arg0, %c0_i32 : i32, i32
  }
  func.func @transform_7(%arg0: i32) -> (i32, i32) {
    %c0_i32 = arith.constant 0 : i32
    %c0_i32_0 = arith.constant 0 : i32
    return %arg0, %c0_i32 : i32, i32
  }
}

</mosaic_0001>

<llo_original>
// kernel: vae_forward.1
$region0: #{vae_forward.1}
  #allocation0 [shape = 'u32[]', space=smem, size = 0x4, offset = 0x4, fixed_abs, tag = 'smem constant byte address 0x4 - core index']
  #allocation1 [shape = 'u32[144,128]{1,0:T(1,128)}', space=vmem, size = 0x12000, scoped, tag = 'internal scratch']
  %s0 = inlined_call_operand.vmem [shape: f32[16,896], index: 0, kind: input, shape index: {}]
  %s1 = inlined_call_operand.vmem [shape: f32[16,128], index: 1, kind: input, shape index: {}]
  %s2 = inlined_call_operand.vmem [shape: bf16[896,128], index: 2, kind: input, shape index: {}]
  %s3 = inlined_call_operand.hbm [shape: bf16[128,640], index: 3, kind: input, shape index: {}]
  %s4 = inlined_call_operand.hbm [shape: bf16[128,896], index: 4, kind: input, shape index: {}]
  %s5 = inlined_call_operand.vmem [shape: f32[1,1664], index: 5, kind: input, shape index: {}]
  %s6 = inlined_call_operand.hbm [shape: f32[16,896], index: 6, kind: output, shape index: {0}]
  %s7 = inlined_call_operand.vmem [shape: f32[16,384], index: 7, kind: output, shape index: {1}]
  %8 = xla_tuple %s6, %s7
  %s9 = sld [smem:[#allocation0]]
  $region73: #{vae_forward.1} parent=0
    _
  %s11 = ssub.s32 1, %s9
  %s12 = scalar_select 0, %s11, %s9
  $region1: #{vae_forward.1} parent=0
    #allocation2 [shape = 'u8[163840]{0}', space=vmem, size = 0x28000, scoped, tag = 'input window, operand 3, single buffered']
    #allocation3 [shape = 's32[2]{0}', space=sflag, size = 0x8, scoped, tag = 'scoped memory for vae_forward.1']
    #allocation4 [shape = 's32[2]{0}', space=sflag, size = 0x8, scoped, tag = 'scoped memory for vae_forward.1']
    #allocation5 [shape = 'u8[229376]{0}', space=vmem, size = 0x38000, scoped, tag = 'input window, operand 4, single buffered']
    #allocation6 [shape = 's32[1]{0}', space=sflag, size = 0x4, scoped, tag = 'scoped memory for vae_forward.1']
    #allocation7 [shape = 'u8[57344]{0}', space=vmem, size = 0xe000, scoped, tag = 'output window, operand 0']
    %13 = vsyncpa [#allocation3], 0
    %14 = vsyncpa [#allocation6], 0
    %15 = vsyncpa [#allocation4], 0
    %s16 = scalar_lea.sflag [#allocation4], 1
    %17 = vsyncpa %s16, 0
    loop: start=0, step=1, limit=4
    $region2: #{vae_forward.1} parent=1 // loop_pre_header
      _
    $region3: #{vae_forward.1} parent=1 // loop_header
      %s19 = sphi 0, %s23
      %p20 = scmp.ge.s32.totalorder %s19, 4
      %s29 = sphi 0, %s31
      %s32 = sphi 0, %s29
      %s33 = sphi 0, %s32
      %s49 = sphi 0, %s33
      %s55 = sphi 0, %s57
      %s58 = sphi 0, %s55
      %s59 = sphi 0, %s58
      %s75 = sphi 0, %s59
      %s79 = sphi 0, %s79
      %s81 = sphi 0, %s79
      %s82 = sphi 0, %s81
      %s96 = sphi 0, %s82
      %s100 = sphi 0, %s100
      %s102 = sphi 0, %s100
      %s103 = sphi 0, %s102
      %s117 = sphi 0, %s103
      %s121 = sphi 0, %s121
      %s123 = sphi 0, %s121
      %s124 = sphi 0, %s123
      %s138 = sphi 0, %s124
      %s142 = sphi 0, %s142
      %s144 = sphi 0, %s142
      %s145 = sphi 0, %s144
      %s159 = sphi 0, %s145
      %s165 = sphi 0, %s167
      %s168 = sphi 0, %s165
      %s169 = sphi 0, %s168
      %s185 = sphi 0, %s169
      %s191 = sphi 0, %s193
      %s194 = sphi 0, %s191
      %s195 = sphi 0, %s194
      %s211 = sphi 0, %s195
    $region4: #{vae_forward.1} parent=1 // loop_header_branch
      %22 = sbr.rel (%p20) target = $region8
    $region5: #{vae_forward.1} parent=1 // loop_body
      %s24 = ssub.s32 %s19, 1
      %s25 = ssub.s32 %s19, 2
      %s26 = sadd.s32 %s19, 1
      %s27 = ssub.s32 %s19, %s26
      %p28 = scmp.eq.s32.totalorder %s27, 0
      %s30 = sadd.s32 %s29, 1
      %s31 = scalar_select %p28, %s29, %s30
      %p34 = pneg %p28
      %p35 = scmp.eq.s32.totalorder %s19, 1
      %p36 = por %p34, %p35
      %p37 = scmp.ne.s32.totalorder %s29, %s32
      %p38 = scmp.eq.s32.totalorder %s19, 0
      %p39 = por %p37, %p38
      %p40 = scmp.ne.s32.totalorder %s29, %s32
      %p41 = scmp.eq.s32.totalorder %s24, 1
      %p42 = por %p40, %p41
      %p43 = scmp.ne.s32.totalorder %s32, %s33
      %p44 = scmp.eq.s32.totalorder %s24, 0
      %p45 = por %p43, %p44
      %p46 = scmp.ne.s32.totalorder %s32, %s33
      %p47 = scmp.eq.s32.totalorder %s25, 1
      %p48 = por %p46, %p47
      %p50 = scmp.ne.s32.totalorder %s33, %s49
      %p51 = scmp.eq.s32.totalorder %s25, 0
      %p52 = por %p50, %p51
      %s53 = ssub.s32 %s19, %s26
      %p54 = scmp.eq.s32.totalorder %s53, 0
      %s56 = sadd.s32 %s55, 1
      %s57 = scalar_select %p54, %s55, %s56
      %p60 = pneg %p54
      %p61 = scmp.eq.s32.totalorder %s19, 1
      %p62 = por %p60, %p61
      %p63 = scmp.ne.s32.totalorder %s55, %s58
      %p64 = scmp.eq.s32.totalorder %s19, 0
      %p65 = por %p63, %p64
      %p66 = scmp.ne.s32.totalorder %s55, %s58
      %p67 = scmp.eq.s32.totalorder %s24, 1
      %p68 = por %p66, %p67
      %p69 = scmp.ne.s32.totalorder %s58, %s59
      %p70 = scmp.eq.s32.totalorder %s24, 0
      %p71 = por %p69, %p70
      %p72 = scmp.ne.s32.totalorder %s58, %s59
      %p73 = scmp.eq.s32.totalorder %s25, 1
      %p74 = por %p72, %p73
      %p76 = scmp.ne.s32.totalorder %s59, %s75
      %p77 = scmp.eq.s32.totalorder %s25, 0
      %p78 = por %p76, %p77
      %s80 = sadd.s32 %s79, 1
      %p83 = scmp.eq.s32.totalorder %s19, 1
      %p84 = scmp.ne.s32.totalorder %s79, %s81
      %p85 = scmp.eq.s32.totalorder %s19, 0
      %p86 = por %p84, %p85
      %p87 = scmp.ne.s32.totalorder %s79, %s81
      %p88 = scmp.eq.s32.totalorder %s24, 1
      %p89 = por %p87, %p88
      %p90 = scmp.ne.s32.totalorder %s81, %s82
      %p91 = scmp.eq.s32.totalorder %s24, 0
      %p92 = por %p90, %p91
      %p93 = scmp.ne.s32.totalorder %s81, %s82
      %p94 = scmp.eq.s32.totalorder %s25, 1
      %p95 = por %p93, %p94
      %p97 = scmp.ne.s32.totalorder %s82, %s96
      %p98 = scmp.eq.s32.totalorder %s25, 0
      %p99 = por %p97, %p98
      %s101 = sadd.s32 %s100, 1
      %p104 = scmp.eq.s32.totalorder %s19, 1
      %p105 = scmp.ne.s32.totalorder %s100, %s102
      %p106 = scmp.eq.s32.totalorder %s19, 0
      %p107 = por %p105, %p106
      %p108 = scmp.ne.s32.totalorder %s100, %s102
      %p109 = scmp.eq.s32.totalorder %s24, 1
      %p110 = por %p108, %p109
      %p111 = scmp.ne.s32.totalorder %s102, %s103
      %p112 = scmp.eq.s32.totalorder %s24, 0
      %p113 = por %p111, %p112
      %p114 = scmp.ne.s32.totalorder %s102, %s103
      %p115 = scmp.eq.s32.totalorder %s25, 1
      %p116 = por %p114, %p115
      %p118 = scmp.ne.s32.totalorder %s103, %s117
      %p119 = scmp.eq.s32.totalorder %s25, 0
      %p120 = por %p118, %p119
      %s122 = sadd.s32 %s121, 1
      %p125 = scmp.eq.s32.totalorder %s19, 1
      %p126 = scmp.ne.s32.totalorder %s121, %s123
      %p127 = scmp.eq.s32.totalorder %s19, 0
      %p128 = por %p126, %p127
      %p129 = scmp.ne.s32.totalorder %s121, %s123
      %p130 = scmp.eq.s32.totalorder %s24, 1
      %p131 = por %p129, %p130
      %p132 = scmp.ne.s32.totalorder %s123, %s124
      %p133 = scmp.eq.s32.totalorder %s24, 0
      %p134 = por %p132, %p133
      %p135 = scmp.ne.s32.totalorder %s123, %s124
      %p136 = scmp.eq.s32.totalorder %s25, 1
      %p137 = por %p135, %p136
      %p139 = scmp.ne.s32.totalorder %s124, %s138
      %p140 = scmp.eq.s32.totalorder %s25, 0
      %p141 = por %p139, %p140
      %s143 = sadd.s32 %s142, 1
      %p146 = scmp.eq.s32.totalorder %s19, 1
      %p147 = scmp.ne.s32.totalorder %s142, %s144
      %p148 = scmp.eq.s32.totalorder %s19, 0
      %p149 = por %p147, %p148
      %p150 = scmp.ne.s32.totalorder %s142, %s144
      %p151 = scmp.eq.s32.totalorder %s24, 1
      %p152 = por %p150, %p151
      %p153 = scmp.ne.s32.totalorder %s144, %s145
      %p154 = scmp.eq.s32.totalorder %s24, 0
      %p155 = por %p153, %p154
      %p156 = scmp.ne.s32.totalorder %s144, %s145
      %p157 = scmp.eq.s32.totalorder %s25, 1
      %p158 = por %p156, %p157
      %p160 = scmp.ne.s32.totalorder %s145, %s159
      %p161 = scmp.eq.s32.totalorder %s25, 0
      %p162 = por %p160, %p161
      %s163 = ssub.s32 %s19, %s26
      %p164 = scmp.eq.s32.totalorder %s163, 0
      %s166 = sadd.s32 %s165, 1
      %s167 = scalar_select %p164, %s165, %s166
      %p170 = pneg %p164
      %p171 = scmp.eq.s32.totalorder %s19, 1
      %p172 = por %p170, %p171
      %p173 = scmp.ne.s32.totalorder %s165, %s168
      %p174 = scmp.eq.s32.totalorder %s19, 0
      %p175 = por %p173, %p174
      %p176 = scmp.ne.s32.totalorder %s165, %s168
      %p177 = scmp.eq.s32.totalorder %s24, 1
      %p178 = por %p176, %p177
      %p179 = scmp.ne.s32.totalorder %s168, %s169
      %p180 = scmp.eq.s32.totalorder %s24, 0
      %p181 = por %p179, %p180
      %p182 = scmp.ne.s32.totalorder %s168, %s169
      %p183 = scmp.eq.s32.totalorder %s25, 1
      %p184 = por %p182, %p183
      %p186 = scmp.ne.s32.totalorder %s169, %s185
      %p187 = scmp.eq.s32.totalorder %s25, 0
      %p188 = por %p186, %p187
      %s189 = ssub.s32 %s19, %s26
      %p190 = scmp.eq.s32.totalorder %s189, 0
      %s192 = sadd.s32 %s191, 1
      %s193 = scalar_select %p190, %s191, %s192
      %p196 = pneg %p190
      %p197 = scmp.eq.s32.totalorder %s19, 1
      %p198 = por %p196, %p197
      %p199 = scmp.ne.s32.totalorder %s191, %s194
      %p200 = scmp.eq.s32.totalorder %s19, 0
      %p201 = por %p199, %p200
      %p202 = scmp.ne.s32.totalorder %s191, %s194
      %p203 = scmp.eq.s32.totalorder %s24, 1
      %p204 = por %p202, %p203
      %p205 = scmp.ne.s32.totalorder %s194, %s195
      %p206 = scmp.eq.s32.totalorder %s24, 0
      %p207 = por %p205, %p206
      %p208 = scmp.ne.s32.totalorder %s194, %s195
      %p209 = scmp.eq.s32.totalorder %s25, 1
      %p210 = por %p208, %p209
      %p212 = scmp.ne.s32.totalorder %s195, %s211
      %p213 = scmp.eq.s32.totalorder %s25, 0
      %p214 = por %p212, %p213
      %p215 = scmp.le.s32.totalorder 1, %s19
      %p216 = scmp.lt.s32.totalorder %s19, 3
      %p217 = pnand %p215, %p216
      %p218 = pneg %p217
      // Predicated region
      $region9: #{vae_forward.1} parent=5 // pred_check
        _
      $region10: #{vae_forward.1} parent=5 // pred_check_branch
        %220 = sbr.rel (%p217) target = $region12
      $region11: #{vae_forward.1} parent=5 // pred_region
        %s221 = ssub.s32 %s19, 1
        // Predicated region
        $region13: #{vae_forward.1} parent=11 // pred_check
          %p222 = pneg %p92
        $region14: #{vae_forward.1} parent=11 // pred_check_branch
          %224 = sbr.rel (%p222) target = $region16
        $region15: #{vae_forward.1} parent=11 // pred_region
          _
        $region16: #{vae_forward.1} parent=11 // pred_fallthru
          _
        // Predicated region
        $region17: #{vae_forward.1} parent=11 // pred_check
          %p225 = pneg %p113
        $region18: #{vae_forward.1} parent=11 // pred_check_branch
          %227 = sbr.rel (%p225) target = $region20
        $region19: #{vae_forward.1} parent=11 // pred_region
          %s229 = ssub.s32 5120, 5120
          %230 = vsyncadd [#allocation3], %s229
          %s231 = sshll.u32 [#allocation2], 4
          %s232 = int_to_ptr.vmem [resolvable:$true] %s231
          %237 = dma.hbm_to_vmem [thread:$0]  %s3, 5120, %s232, [#allocation3], 320, 320, 20
        $region20: #{vae_forward.1} parent=11 // pred_fallthru
          _
        // Predicated region
        $region21: #{vae_forward.1} parent=11 // pred_check
          %p238 = pneg %p134
        $region22: #{vae_forward.1} parent=11 // pred_check_branch
          %240 = sbr.rel (%p238) target = $region24
        $region23: #{vae_forward.1} parent=11 // pred_region
          %s242 = ssub.s32 7168, 7168
          %243 = vsyncadd [#allocation6], %s242
          %s244 = sshll.u32 [#allocation5], 4
          %s245 = int_to_ptr.vmem [resolvable:$true] %s244
          %250 = dma.hbm_to_vmem [thread:$0]  %s4, 7168, %s245, [#allocation6], 448, 448, 28
        $region24: #{vae_forward.1} parent=11 // pred_fallthru
          _
        // Predicated region
        $region25: #{vae_forward.1} parent=11 // pred_check
          %p251 = pneg %p155
        $region26: #{vae_forward.1} parent=11 // pred_check_branch
          %253 = sbr.rel (%p251) target = $region28
        $region27: #{vae_forward.1} parent=11 // pred_region
          _
        $region28: #{vae_forward.1} parent=11 // pred_fallthru
          _
      $region12: #{vae_forward.1} parent=5 // pred_fallthru
        _
      %p254 = scmp.lt.s32.totalorder %s19, 2
      // Predicated region
      $region29: #{vae_forward.1} parent=5 // pred_check
        %p255 = pneg %p254
      $region30: #{vae_forward.1} parent=5 // pred_check_branch
        %257 = sbr.rel (%p255) target = $region32
      $region31: #{vae_forward.1} parent=5 // pred_region
        // Predicated region
        $region33: #{vae_forward.1} parent=31 // pred_check
          %p258 = pneg %p39
        $region34: #{vae_forward.1} parent=31 // pred_check_branch
          %260 = sbr.rel (%p258) target = $region36
        $region35: #{vae_forward.1} parent=31 // pred_region
          %p261 = scmp.lt.s32.totalorder %s19, 1
          %s262 = scalar_select %p261, %s19, 1
          %s263 = smul.addr %s262, 7
          %s264 = smul.addr %s263, 8
          %s265 = scalar_lea.vmem %s0, %s264
        $region36: #{vae_forward.1} parent=31 // pred_fallthru
          _
        // Predicated region
        $region37: #{vae_forward.1} parent=31 // pred_check
          %p266 = pneg %p65
        $region38: #{vae_forward.1} parent=31 // pred_check_branch
          %268 = sbr.rel (%p266) target = $region40
        $region39: #{vae_forward.1} parent=31 // pred_region
          %p269 = scmp.lt.s32.totalorder %s19, 1
          %s270 = scalar_select %p269, %s19, 1
          %s271 = smul.addr %s270, 8
          %s272 = scalar_lea.vmem %s1, %s271
        $region40: #{vae_forward.1} parent=31 // pred_fallthru
          _
      $region32: #{vae_forward.1} parent=5 // pred_fallthru
        _
      %p273 = scmp.le.s32.totalorder 1, %s19
      %p274 = scmp.lt.s32.totalorder %s19, 3
      %p275 = pnand %p273, %p274
      %p276 = pneg %p275
      // Predicated region
      $region41: #{vae_forward.1} parent=5 // pred_check
        _
      $region42: #{vae_forward.1} parent=5 // pred_check_branch
        %278 = sbr.rel (%p275) target = $region44
      $region43: #{vae_forward.1} parent=5 // pred_region
        %s279 = ssub.s32 %s19, 1
        // Predicated region
        $region45: #{vae_forward.1} parent=43 // pred_check
          %p280 = pneg %p113
        $region46: #{vae_forward.1} parent=43 // pred_check_branch
          %282 = sbr.rel (%p280) target = $region48
        $region47: #{vae_forward.1} parent=43 // pred_region
          %283 = dma.done [#allocation3], 5120
        $region48: #{vae_forward.1} parent=43 // pred_fallthru
          _
        // Predicated region
        $region49: #{vae_forward.1} parent=43 // pred_check
          %p284 = pneg %p134
        $region50: #{vae_forward.1} parent=43 // pred_check_branch
          %286 = sbr.rel (%p284) target = $region52
        $region51: #{vae_forward.1} parent=43 // pred_region
          %287 = dma.done [#allocation6], 7168
        $region52: #{vae_forward.1} parent=43 // pred_fallthru
          _
        %p288 = scmp.lt.s32.totalorder %s24, 1
        %s289 = scalar_select %p288, %s24, 1
        %s290 = smul.addr %s289, 7
        %s291 = smul.addr %s290, 8
        %s292 = scalar_lea.vmem %s0, %s291
        %p293 = pneg %p45
        %p294 = pneg %p42
        %p295 = scmp.lt.s32.totalorder %s24, 1
        %s296 = scalar_select %p295, %s24, 1
        %s297 = smul.addr %s296, 8
        %s298 = scalar_lea.vmem %s1, %s297
        %p299 = pneg %p71
        %p300 = pneg %p68
        %p301 = pneg %p92
        %p302 = pneg %p89
        %p303 = pneg %p113
        %p304 = pneg %p110
        %p305 = pneg %p134
        %p306 = pneg %p131
        %p307 = pneg %p155
        %p308 = pneg %p152
        %p309 = pneg %p181
        %p310 = pneg %p178
        %s311 = sand.u32 %s168, 1
        %s312 = scalar_lea.sflag [#allocation4], %s311
        %s313 = sand.u32 %s168, 1
        %s314 = smul.addr %s313, 56
        %s315 = scalar_lea.vmem [#allocation7], %s314
        %p316 = pneg %p207
        %p317 = pneg %p204
        %p318 = scmp.lt.s32.totalorder %s24, 1
        %s319 = scalar_select %p318, %s24, 1
        %s320 = smul.addr %s319, 3
        %s321 = smul.addr %s320, 8
        %s322 = scalar_lea.vmem %s7, %s321
        %p323 = scmp.lt.s32.totalorder %s24, 1
        %s324 = scalar_select %p323, %s24, 1
        %s325 = smul.addr %s324, 7
        %s326 = smul.addr %s325, 8
        %s327 = scalar_lea.vmem %s0, %s326
        %p328 = scmp.lt.s32.totalorder %s24, 1
        %s329 = scalar_select %p328, %s24, 1
        %s330 = smul.addr %s329, 8
        %s331 = scalar_lea.vmem %s1, %s330
        %p332 = scmp.lt.s32.totalorder %s24, 1
        %s333 = scalar_select %p332, %s24, 1
        %s334 = smul.addr %s333, 3
        %s335 = smul.addr %s334, 8
        %s336 = scalar_lea.vmem %s7, %s335
        %v338 = vld [vmem:[#allocation2] sm:$0xf]
        %v339 = vld [vmem:[#allocation2 + $0x14] sm:$0xf]
        %v340 = vld [vmem:[#allocation2 + $0x28] sm:$0xf]
        %v341 = vld [vmem:[#allocation2 + $0x3c] sm:$0xf]
        %v342 = vld [vmem:[#allocation2 + $0x50] sm:$0xf]
        %v343 = vld [vmem:[#allocation2 + $0x64] sm:$0xf]
        %v344 = vld [vmem:[#allocation2 + $0x78] sm:$0xf]
        %v345 = vld [vmem:[#allocation2 + $0x8c] sm:$0xf]
        %v346 = vld [vmem:[#allocation2 + $0xa0] sm:$0xf]
        %v347 = vld [vmem:[#allocation2 + $0xb4] sm:$0xf]
        %v348 = vld [vmem:[#allocation2 + $0xc8] sm:$0xf]
        %v349 = vld [vmem:[#allocation2 + $0xdc] sm:$0xf]
        %v350 = vld [vmem:[#allocation2 + $0xf0] sm:$0xf]
        %v351 = vld [vmem:[#allocation2 + $0x104] sm:$0xf]
        %v352 = vld [vmem:[#allocation2 + $0x118] sm:$0xf]
        %v353 = vld [vmem:[#allocation2 + $0x12c] sm:$0xf]
        %v354 = vld [vmem:[#allocation2 + $0x4] sm:$0xff]
        %v355 = vld [vmem:[#allocation2 + $0x18] sm:$0xff]
        %v356 = vld [vmem:[#allocation2 + $0x2c] sm:$0xff]
        %v357 = vld [vmem:[#allocation2 + $0x40] sm:$0xff]
        %v358 = vld [vmem:[#allocation2 + $0x54] sm:$0xff]
        %v359 = vld [vmem:[#allocation2 + $0x68] sm:$0xff]
        %v360 = vld [vmem:[#allocation2 + $0x7c] sm:$0xff]
        %v361 = vld [vmem:[#allocation2 + $0x90] sm:$0xff]
        %v362 = vld [vmem:[#allocation2 + $0xa4] sm:$0xff]
        %v363 = vld [vmem:[#allocation2 + $0xb8] sm:$0xff]
        %v364 = vld [vmem:[#allocation2 + $0xcc] sm:$0xff]
        %v365 = vld [vmem:[#allocation2 + $0xe0] sm:$0xff]
        %v366 = vld [vmem:[#allocation2 + $0xf4] sm:$0xff]
        %v367 = vld [vmem:[#allocation2 + $0x108] sm:$0xff]
        %v368 = vld [vmem:[#allocation2 + $0x11c] sm:$0xff]
        %v369 = vld [vmem:[#allocation2 + $0x130] sm:$0xff]
        %v370 = vld [vmem:[#allocation2 + $0xc] sm:$0xf]
        %v371 = vld [vmem:[#allocation2 + $0x20] sm:$0xf]
        %v372 = vld [vmem:[#allocation2 + $0x34] sm:$0xf]
        %v373 = vld [vmem:[#allocation2 + $0x48] sm:$0xf]
        %v374 = vld [vmem:[#allocation2 + $0x5c] sm:$0xf]
        %v375 = vld [vmem:[#allocation2 + $0x70] sm:$0xf]
        %v376 = vld [vmem:[#allocation2 + $0x84] sm:$0xf]
        %v377 = vld [vmem:[#allocation2 + $0x98] sm:$0xf]
        %v378 = vld [vmem:[#allocation2 + $0xac] sm:$0xf]
        %v379 = vld [vmem:[#allocation2 + $0xc0] sm:$0xf]
        %v380 = vld [vmem:[#allocation2 + $0xd4] sm:$0xf]
        %v381 = vld [vmem:[#allocation2 + $0xe8] sm:$0xf]
        %v382 = vld [vmem:[#allocation2 + $0xfc] sm:$0xf]
        %v383 = vld [vmem:[#allocation2 + $0x110] sm:$0xf]
        %v384 = vld [vmem:[#allocation2 + $0x124] sm:$0xf]
        %v385 = vld [vmem:[#allocation2 + $0x138] sm:$0xf]
        %v386 = vld [vmem:[#allocation2 + $0x10] sm:$0xf]
        %v387 = vld [vmem:[#allocation2 + $0x24] sm:$0xf]
        %v388 = vld [vmem:[#allocation2 + $0x38] sm:$0xf]
        %v389 = vld [vmem:[#allocation2 + $0x4c] sm:$0xf]
        %v390 = vld [vmem:[#allocation2 + $0x60] sm:$0xf]
        %v391 = vld [vmem:[#allocation2 + $0x74] sm:$0xf]
        %v392 = vld [vmem:[#allocation2 + $0x88] sm:$0xf]
        %v393 = vld [vmem:[#allocation2 + $0x9c] sm:$0xf]
        %v394 = vld [vmem:[#allocation2 + $0xb0] sm:$0xf]
        %v395 = vld [vmem:[#allocation2 + $0xc4] sm:$0xf]
        %v396 = vld [vmem:[#allocation2 + $0xd8] sm:$0xf]
        %v397 = vld [vmem:[#allocation2 + $0xec] sm:$0xf]
        %v398 = vld [vmem:[#allocation2 + $0x100] sm:$0xf]
        %v399 = vld [vmem:[#allocation2 + $0x114] sm:$0xf]
        %v400 = vld [vmem:[#allocation2 + $0x128] sm:$0xf]
        %v401 = vld [vmem:[#allocation2 + $0x13c] sm:$0xf]
        %v402 = vld [vmem:[%s5] sm:$0x1]
        %v403 = vld [vmem:[%s5 + $0x1] sm:$0x1]
        %v404 = vld [vmem:[%s5 + $0x2] sm:$0x3]
        %v405 = vld [vmem:[%s5 + $0x4] sm:$0x1]
        %v406 = vld [vmem:[%s5 + $0x5] sm:$0x1]
        %v407 = vld [vmem:[%s5 + $0x6] sm:$0xff]
        %v408 = vld [vmem:[%s327] sm:$0xff]
        %v409 = vld [vmem:[%s327 + $0x8] sm:$0xff]
        %v410 = vld [vmem:[%s327 + $0x10] sm:$0xff]
        %v411 = vld [vmem:[%s327 + $0x18] sm:$0xff]
        %v412 = vld [vmem:[%s327 + $0x20] sm:$0xff]
        %v413 = vld [vmem:[%s327 + $0x28] sm:$0xff]
        %v414 = vld [vmem:[%s327 + $0x30] sm:$0xff]
        %v415 = vld [vmem:[%s331] sm:$0xff]
        %v416 = vpack.c.bf16 %v408, %v408
        %v417 = vpack.c.bf16 %v409, %v409
        %v418 = vpack.c.bf16 %v410, %v410
        %v419 = vpack.c.bf16 %v411, %v411
        %v420 = vpack.c.bf16 %v412, %v412
        %v421 = vpack.c.bf16 %v413, %v413
        %v422 = vpack.c.bf16 %v414, %v414
        %v423 = vld [vmem:[%s2] sm:$0xf]
        %v424 = vld [vmem:[%s2 + $0x4] sm:$0xf]
        %v425 = vld [vmem:[%s2 + $0x8] sm:$0xf]
        %v426 = vld [vmem:[%s2 + $0xc] sm:$0xf]
        %v427 = vld [vmem:[%s2 + $0x10] sm:$0xf]
        %v428 = vld [vmem:[%s2 + $0x14] sm:$0xf]
        %v429 = vld [vmem:[%s2 + $0x18] sm:$0xf]
        %v430 = vld [vmem:[%s2 + $0x1c] sm:$0xf]
        %v431 = vld [vmem:[%s2 + $0x20] sm:$0xf]
        %v432 = vld [vmem:[%s2 + $0x24] sm:$0xf]
        %v433 = vld [vmem:[%s2 + $0x28] sm:$0xf]
        %v434 = vld [vmem:[%s2 + $0x2c] sm:$0xf]
        %v435 = vld [vmem:[%s2 + $0x30] sm:$0xf]
        %v436 = vld [vmem:[%s2 + $0x34] sm:$0xf]
        %v437 = vld [vmem:[%s2 + $0x38] sm:$0xf]
        %v438 = vld [vmem:[%s2 + $0x3c] sm:$0xf]
        %v439 = vld [vmem:[%s2 + $0x40] sm:$0xf]
        %v440 = vld [vmem:[%s2 + $0x44] sm:$0xf]
        %v441 = vld [vmem:[%s2 + $0x48] sm:$0xf]
        %v442 = vld [vmem:[%s2 + $0x4c] sm:$0xf]
        %v443 = vld [vmem:[%s2 + $0x50] sm:$0xf]
        %v444 = vld [vmem:[%s2 + $0x54] sm:$0xf]
        %v445 = vld [vmem:[%s2 + $0x58] sm:$0xf]
        %v446 = vld [vmem:[%s2 + $0x5c] sm:$0xf]
        %v447 = vld [vmem:[%s2 + $0x60] sm:$0xf]
        %v448 = vld [vmem:[%s2 + $0x64] sm:$0xf]
        %v449 = vld [vmem:[%s2 + $0x68] sm:$0xf]
        %v450 = vld [vmem:[%s2 + $0x6c] sm:$0xf]
        %v451 = vld [vmem:[%s2 + $0x70] sm:$0xf]
        %v452 = vld [vmem:[%s2 + $0x74] sm:$0xf]
        %v453 = vld [vmem:[%s2 + $0x78] sm:$0xf]
        %v454 = vld [vmem:[%s2 + $0x7c] sm:$0xf]
        %v455 = vld [vmem:[%s2 + $0x80] sm:$0xf]
        %v456 = vld [vmem:[%s2 + $0x84] sm:$0xf]
        %v457 = vld [vmem:[%s2 + $0x88] sm:$0xf]
        %v458 = vld [vmem:[%s2 + $0x8c] sm:$0xf]
        %v459 = vld [vmem:[%s2 + $0x90] sm:$0xf]
        %v460 = vld [vmem:[%s2 + $0x94] sm:$0xf]
        %v461 = vld [vmem:[%s2 + $0x98] sm:$0xf]
        %v462 = vld [vmem:[%s2 + $0x9c] sm:$0xf]
        %v463 = vld [vmem:[%s2 + $0xa0] sm:$0xf]
        %v464 = vld [vmem:[%s2 + $0xa4] sm:$0xf]
        %v465 = vld [vmem:[%s2 + $0xa8] sm:$0xf]
        %v466 = vld [vmem:[%s2 + $0xac] sm:$0xf]
        %v467 = vld [vmem:[%s2 + $0xb0] sm:$0xf]
        %v468 = vld [vmem:[%s2 + $0xb4] sm:$0xf]
        %v469 = vld [vmem:[%s2 + $0xb8] sm:$0xf]
        %v470 = vld [vmem:[%s2 + $0xbc] sm:$0xf]
        %v471 = vld [vmem:[%s2 + $0xc0] sm:$0xf]
        %v472 = vld [vmem:[%s2 + $0xc4] sm:$0xf]
        %v473 = vld [vmem:[%s2 + $0xc8] sm:$0xf]
        %v474 = vld [vmem:[%s2 + $0xcc] sm:$0xf]
        %v475 = vld [vmem:[%s2 + $0xd0] sm:$0xf]
        %v476 = vld [vmem:[%s2 + $0xd4] sm:$0xf]
        %v477 = vld [vmem:[%s2 + $0xd8] sm:$0xf]
        %v478 = vld [vmem:[%s2 + $0xdc] sm:$0xf]
        %v479 = vld [vmem:[%s2 + $0xe0] sm:$0xf]
        %v480 = vld [vmem:[%s2 + $0xe4] sm:$0xf]
        %v481 = vld [vmem:[%s2 + $0xe8] sm:$0xf]
        %v482 = vld [vmem:[%s2 + $0xec] sm:$0xf]
        %v483 = vld [vmem:[%s2 + $0xf0] sm:$0xf]
        %v484 = vld [vmem:[%s2 + $0xf4] sm:$0xf]
        %v485 = vld [vmem:[%s2 + $0xf8] sm:$0xf]
        %v486 = vld [vmem:[%s2 + $0xfc] sm:$0xf]
        %v487 = vld [vmem:[%s2 + $0x100] sm:$0xf]
        %v488 = vld [vmem:[%s2 + $0x104] sm:$0xf]
        %v489 = vld [vmem:[%s2 + $0x108] sm:$0xf]
        %v490 = vld [vmem:[%s2 + $0x10c] sm:$0xf]
        %v491 = vld [vmem:[%s2 + $0x110] sm:$0xf]
        %v492 = vld [vmem:[%s2 + $0x114] sm:$0xf]
        %v493 = vld [vmem:[%s2 + $0x118] sm:$0xf]
        %v494 = vld [vmem:[%s2 + $0x11c] sm:$0xf]
        %v495 = vld [vmem:[%s2 + $0x120] sm:$0xf]
        %v496 = vld [vmem:[%s2 + $0x124] sm:$0xf]
        %v497 = vld [vmem:[%s2 + $0x128] sm:$0xf]
        %v498 = vld [vmem:[%s2 + $0x12c] sm:$0xf]
        %v499 = vld [vmem:[%s2 + $0x130] sm:$0xf]
        %v500 = vld [vmem:[%s2 + $0x134] sm:$0xf]
        %v501 = vld [vmem:[%s2 + $0x138] sm:$0xf]
        %v502 = vld [vmem:[%s2 + $0x13c] sm:$0xf]
        %v503 = vld [vmem:[%s2 + $0x140] sm:$0xf]
        %v504 = vld [vmem:[%s2 + $0x144] sm:$0xf]
        %v505 = vld [vmem:[%s2 + $0x148] sm:$0xf]
        %v506 = vld [vmem:[%s2 + $0x14c] sm:$0xf]
        %v507 = vld [vmem:[%s2 + $0x150] sm:$0xf]
        %v508 = vld [vmem:[%s2 + $0x154] sm:$0xf]
        %v509 = vld [vmem:[%s2 + $0x158] sm:$0xf]
        %v510 = vld [vmem:[%s2 + $0x15c] sm:$0xf]
        %v511 = vld [vmem:[%s2 + $0x160] sm:$0xf]
        %v512 = vld [vmem:[%s2 + $0x164] sm:$0xf]
        %v513 = vld [vmem:[%s2 + $0x168] sm:$0xf]
        %v514 = vld [vmem:[%s2 + $0x16c] sm:$0xf]
        %v515 = vld [vmem:[%s2 + $0x170] sm:$0xf]
        %v516 = vld [vmem:[%s2 + $0x174] sm:$0xf]
        %v517 = vld [vmem:[%s2 + $0x178] sm:$0xf]
        %v518 = vld [vmem:[%s2 + $0x17c] sm:$0xf]
        %v519 = vld [vmem:[%s2 + $0x180] sm:$0xf]
        %v520 = vld [vmem:[%s2 + $0x184] sm:$0xf]
        %v521 = vld [vmem:[%s2 + $0x188] sm:$0xf]
        %v522 = vld [vmem:[%s2 + $0x18c] sm:$0xf]
        %v523 = vld [vmem:[%s2 + $0x190] sm:$0xf]
        %v524 = vld [vmem:[%s2 + $0x194] sm:$0xf]
        %v525 = vld [vmem:[%s2 + $0x198] sm:$0xf]
        %v526 = vld [vmem:[%s2 + $0x19c] sm:$0xf]
        %v527 = vld [vmem:[%s2 + $0x1a0] sm:$0xf]
        %v528 = vld [vmem:[%s2 + $0x1a4] sm:$0xf]
        %v529 = vld [vmem:[%s2 + $0x1a8] sm:$0xf]
        %v530 = vld [vmem:[%s2 + $0x1ac] sm:$0xf]
        %v531 = vld [vmem:[%s2 + $0x1b0] sm:$0xf]
        %v532 = vld [vmem:[%s2 + $0x1b4] sm:$0xf]
        %v533 = vld [vmem:[%s2 + $0x1b8] sm:$0xf]
        %v534 = vld [vmem:[%s2 + $0x1bc] sm:$0xf]
        %v536 = vlaneseq
        %v537 = vshrl.u32 %v536, 7
        %v538 = vsub.s32 0, %v537
        %v539 = vrot.slane %v402, %v538
        %v653 = vunpack.c.l.b16 %v423
        %v654 = vunpack.c.l.b16 %v424
        %v655 = vunpack.c.l.b16 %v425
        %v656 = vunpack.c.l.b16 %v426
        %v657 = vunpack.c.l.b16 %v427
        %v658 = vunpack.c.l.b16 %v428
        %v659 = vunpack.c.l.b16 %v429
        %v660 = vunpack.c.l.b16 %v430
        %v661 = vunpack.c.l.b16 %v431
        %v662 = vunpack.c.l.b16 %v432
        %v663 = vunpack.c.l.b16 %v433
        %v664 = vunpack.c.l.b16 %v434
        %v665 = vunpack.c.l.b16 %v435
        %v666 = vunpack.c.l.b16 %v436
        %v667 = vunpack.c.l.b16 %v437
        %v668 = vunpack.c.l.b16 %v438
        %v669 = vunpack.c.l.b16 %v439
        %v670 = vunpack.c.l.b16 %v440
        %v671 = vunpack.c.l.b16 %v441
        %v672 = vunpack.c.l.b16 %v442
        %v673 = vunpack.c.l.b16 %v443
        %v674 = vunpack.c.l.b16 %v444
        %v675 = vunpack.c.l.b16 %v445
        %v676 = vunpack.c.l.b16 %v446
        %v677 = vunpack.c.l.b16 %v447
        %v678 = vunpack.c.l.b16 %v448
        %v679 = vunpack.c.l.b16 %v449
        %v680 = vunpack.c.l.b16 %v450
        %v681 = vunpack.c.l.b16 %v451
        %v682 = vunpack.c.l.b16 %v452
        %v683 = vunpack.c.l.b16 %v453
        %v684 = vunpack.c.l.b16 %v454
        %v685 = vunpack.c.l.b16 %v455
        %v686 = vunpack.c.l.b16 %v456
        %v687 = vunpack.c.l.b16 %v457
        %v688 = vunpack.c.l.b16 %v458
        %v689 = vunpack.c.l.b16 %v459
        %v690 = vunpack.c.l.b16 %v460
        %v691 = vunpack.c.l.b16 %v461
        %v692 = vunpack.c.l.b16 %v462
        %v693 = vunpack.c.l.b16 %v463
        %v694 = vunpack.c.l.b16 %v464
        %v695 = vunpack.c.l.b16 %v465
        %v696 = vunpack.c.l.b16 %v466
        %v697 = vunpack.c.l.b16 %v467
        %v698 = vunpack.c.l.b16 %v468
        %v699 = vunpack.c.l.b16 %v469
        %v700 = vunpack.c.l.b16 %v470
        %v701 = vunpack.c.l.b16 %v471
        %v702 = vunpack.c.l.b16 %v472
        %v703 = vunpack.c.l.b16 %v473
        %v704 = vunpack.c.l.b16 %v474
        %v705 = vunpack.c.l.b16 %v475
        %v706 = vunpack.c.l.b16 %v476
        %v707 = vunpack.c.l.b16 %v477
        %v708 = vunpack.c.l.b16 %v478
        %v709 = vunpack.c.l.b16 %v479
        %v710 = vunpack.c.l.b16 %v480
        %v711 = vunpack.c.l.b16 %v481
        %v712 = vunpack.c.l.b16 %v482
        %v713 = vunpack.c.l.b16 %v483
        %v714 = vunpack.c.l.b16 %v484
        %v715 = vunpack.c.l.b16 %v485
        %v716 = vunpack.c.l.b16 %v486
        %v717 = vunpack.c.l.b16 %v487
        %v718 = vunpack.c.l.b16 %v488
        %v719 = vunpack.c.l.b16 %v489
        %v720 = vunpack.c.l.b16 %v490
        %v721 = vunpack.c.l.b16 %v491
        %v722 = vunpack.c.l.b16 %v492
        %v723 = vunpack.c.l.b16 %v493
        %v724 = vunpack.c.l.b16 %v494
        %v725 = vunpack.c.l.b16 %v495
        %v726 = vunpack.c.l.b16 %v496
        %v727 = vunpack.c.l.b16 %v497
        %v728 = vunpack.c.l.b16 %v498
        %v729 = vunpack.c.l.b16 %v499
        %v730 = vunpack.c.l.b16 %v500
        %v731 = vunpack.c.l.b16 %v501
        %v732 = vunpack.c.l.b16 %v502
        %v733 = vunpack.c.l.b16 %v503
        %v734 = vunpack.c.l.b16 %v504
        %v735 = vunpack.c.l.b16 %v505
        %v736 = vunpack.c.l.b16 %v506
        %v737 = vunpack.c.l.b16 %v507
        %v738 = vunpack.c.l.b16 %v508
        %v739 = vunpack.c.l.b16 %v509
        %v740 = vunpack.c.l.b16 %v510
        %v741 = vunpack.c.l.b16 %v511
        %v742 = vunpack.c.l.b16 %v512
        %v743 = vunpack.c.l.b16 %v513
        %v744 = vunpack.c.l.b16 %v514
        %v745 = vunpack.c.l.b16 %v515
        %v746 = vunpack.c.l.b16 %v516
        %v747 = vunpack.c.l.b16 %v517
        %v748 = vunpack.c.l.b16 %v518
        %v749 = vunpack.c.l.b16 %v519
        %v750 = vunpack.c.l.b16 %v520
        %v751 = vunpack.c.l.b16 %v521
        %v752 = vunpack.c.l.b16 %v522
        %v753 = vunpack.c.l.b16 %v523
        %v754 = vunpack.c.l.b16 %v524
        %v755 = vunpack.c.l.b16 %v525
        %v756 = vunpack.c.l.b16 %v526
        %v757 = vunpack.c.l.b16 %v527
        %v758 = vunpack.c.l.b16 %v528
        %v759 = vunpack.c.l.b16 %v529
        %v760 = vunpack.c.l.b16 %v530
        %v761 = vunpack.c.l.b16 %v531
        %v762 = vunpack.c.l.b16 %v532
        %v763 = vunpack.c.l.b16 %v533
        %v764 = vunpack.c.l.b16 %v534
        %v765 = vpack.c.b16 %v654, %v653
        %v766 = vpack.c.b16 %v656, %v655
        %v767 = vpack.c.b16 %v658, %v657
        %v768 = vpack.c.b16 %v660, %v659
        %v769 = vpack.c.b16 %v662, %v661
        %v770 = vpack.c.b16 %v664, %v663
        %v771 = vpack.c.b16 %v666, %v665
        %v772 = vpack.c.b16 %v668, %v667
        %v773 = vpack.c.b16 %v670, %v669
        %v774 = vpack.c.b16 %v672, %v671
        %v775 = vpack.c.b16 %v674, %v673
        %v776 = vpack.c.b16 %v676, %v675
        %v777 = vpack.c.b16 %v678, %v677
        %v778 = vpack.c.b16 %v680, %v679
        %v779 = vpack.c.b16 %v682, %v681
        %v780 = vpack.c.b16 %v684, %v683
        %v781 = vpack.c.b16 %v686, %v685
        %v782 = vpack.c.b16 %v688, %v687
        %v783 = vpack.c.b16 %v690, %v689
        %v784 = vpack.c.b16 %v692, %v691
        %v785 = vpack.c.b16 %v694, %v693
        %v786 = vpack.c.b16 %v696, %v695
        %v787 = vpack.c.b16 %v698, %v697
        %v788 = vpack.c.b16 %v700, %v699
        %v789 = vpack.c.b16 %v702, %v701
        %v790 = vpack.c.b16 %v704, %v703
        %v791 = vpack.c.b16 %v706, %v705
        %v792 = vpack.c.b16 %v708, %v707
        %v793 = vpack.c.b16 %v710, %v709
        %v794 = vpack.c.b16 %v712, %v711
        %v795 = vpack.c.b16 %v714, %v713
        %v796 = vpack.c.b16 %v716, %v715
        %v797 = vpack.c.b16 %v718, %v717
        %v798 = vpack.c.b16 %v720, %v719
        %v799 = vpack.c.b16 %v722, %v721
        %v800 = vpack.c.b16 %v724, %v723
        %v801 = vpack.c.b16 %v726, %v725
        %v802 = vpack.c.b16 %v728, %v727
        %v803 = vpack.c.b16 %v730, %v729
        %v804 = vpack.c.b16 %v732, %v731
        %v805 = vpack.c.b16 %v734, %v733
        %v806 = vpack.c.b16 %v736, %v735
        %v807 = vpack.c.b16 %v738, %v737
        %v808 = vpack.c.b16 %v740, %v739
        %v809 = vpack.c.b16 %v742, %v741
        %v810 = vpack.c.b16 %v744, %v743
        %v811 = vpack.c.b16 %v746, %v745
        %v812 = vpack.c.b16 %v748, %v747
        %v813 = vpack.c.b16 %v750, %v749
        %v814 = vpack.c.b16 %v752, %v751
        %v815 = vpack.c.b16 %v754, %v753
        %v816 = vpack.c.b16 %v756, %v755
        %v817 = vpack.c.b16 %v758, %v757
        %v818 = vpack.c.b16 %v760, %v759
        %v819 = vpack.c.b16 %v762, %v761
        %v820 = vpack.c.b16 %v764, %v763
        %877 = vmatprep.subr.bf16.mxu0 0
        %878 = vmatpush1.bf16.msra.mxu0 %v765
        %879 = vmatprep.subr.bf16.mxu0 0
        %880 = vmatpush1.bf16.msra.mxu0 %v766
        %881 = vmatprep.subr.bf16.mxu0 0
        %882 = vmatpush1.bf16.msra.mxu0 %v767
        %883 = vmatprep.subr.bf16.mxu0 0
        %884 = vmatpush1.bf16.msra.mxu0 %v768
        %885 = vmatprep.subr.bf16.mxu0 0
        %886 = vmatpush1.bf16.msra.mxu0 %v769
        %887 = vmatprep.subr.bf16.mxu0 0
        %888 = vmatpush1.bf16.msra.mxu0 %v770
        %889 = vmatprep.subr.bf16.mxu0 0
        %890 = vmatpush1.bf16.msra.mxu0 %v771
        %891 = vmatprep.subr.bf16.mxu0 0
        %892 = vmatpush1.bf16.msra.mxu0 %v772
        %893 = vmatprep.subr.bf16.mxu0 0
        %894 = vmatpush1.bf16.msra.mxu0 %v773
        %895 = vmatprep.subr.bf16.mxu0 0
        %896 = vmatpush1.bf16.msra.mxu0 %v774
        %897 = vmatprep.subr.bf16.mxu0 0
        %898 = vmatpush1.bf16.msra.mxu0 %v775
        %899 = vmatprep.subr.bf16.mxu0 0
        %900 = vmatpush1.bf16.msra.mxu0 %v776
        %901 = vmatprep.subr.bf16.mxu0 0
        %902 = vmatpush1.bf16.msra.mxu0 %v777
        %903 = vmatprep.subr.bf16.mxu0 0
        %904 = vmatpush1.bf16.msra.mxu0 %v778
        %905 = vmatprep.subr.bf16.mxu0 0
        %906 = vmatpush1.bf16.msra.mxu0 %v779
        %907 = vmatprep.subr.bf16.mxu0 0
        %908 = vmatpush1.bf16.msra.mxu0 %v780
        %909 = vmatprep.mubr.bf16.mxu0 %v417
        %910 = vmatmul.mubr.bf16.gmra.mrb[0].mxu0 %v416
        %v911 = vpop.f32.mrb[0].mxu0
        %v912 = vadd.f32 %v539, %v911
        %v913 = vpop.f32.mrb[0].mxu0
        %v914 = vpop.f32.mrb[0].mxu0
        %v915 = vpop.f32.mrb[0].mxu0
        %916 = vdwg.mxu0
        %917 = vmatprep.subr.bf16.mxu0 0
        %918 = vmatpush1.bf16.msra.mxu0 %v781
        %919 = vmatprep.subr.bf16.mxu0 0
        %920 = vmatpush1.bf16.msra.mxu0 %v782
        %921 = vmatprep.subr.bf16.mxu0 0
        %922 = vmatpush1.bf16.msra.mxu0 %v783
        %923 = vmatprep.subr.bf16.mxu0 0
        %924 = vmatpush1.bf16.msra.mxu0 %v784
        %925 = vmatprep.subr.bf16.mxu0 0
        %926 = vmatpush1.bf16.msra.mxu0 %v785
        %927 = vmatprep.subr.bf16.mxu0 0
        %928 = vmatpush1.bf16.msra.mxu0 %v786
        %929 = vmatprep.subr.bf16.mxu0 0
        %930 = vmatpush1.bf16.msra.mxu0 %v787
        %931 = vmatprep.subr.bf16.mxu0 0
        %932 = vmatpush1.bf16.msra.mxu0 %v788
        %933 = vmatprep.subr.bf16.mxu0 0
        %934 = vmatpush1.bf16.msra.mxu0 %v789
        %935 = vmatprep.subr.bf16.mxu0 0
        %936 = vmatpush1.bf16.msra.mxu0 %v790
        %937 = vmatprep.subr.bf16.mxu0 0
        %938 = vmatpush1.bf16.msra.mxu0 %v791
        %939 = vmatprep.subr.bf16.mxu0 0
        %940 = vmatpush1.bf16.msra.mxu0 %v792
        %941 = vmatprep.subr.bf16.mxu0 0
        %942 = vmatpush1.bf16.msra.mxu0 %v793
        %943 = vmatprep.subr.bf16.mxu0 0
        %944 = vmatpush1.bf16.msra.mxu0 %v794
        %945 = vmatprep.subr.bf16.mxu0 0
        %946 = vmatpush1.bf16.msra.mxu0 %v795
        %947 = vmatprep.subr.bf16.mxu0 0
        %948 = vmatpush1.bf16.msra.mxu0 %v796
        %949 = vmatprep.mubr.bf16.mxu0 %v419
        %950 = vmatmul.mubr.bf16.gmra.mrb[0].mxu0 %v418
        %v951 = vpop.f32.mrb[0].mxu0
        %v952 = vadd.f32 %v912, %v951
        %v953 = vpop.f32.mrb[0].mxu0
        %v954 = vpop.f32.mrb[0].mxu0
        %v955 = vpop.f32.mrb[0].mxu0
        %956 = vdwg.mxu0
        %957 = vmatprep.subr.bf16.mxu0 0
        %958 = vmatpush1.bf16.msra.mxu0 %v797
        %959 = vmatprep.subr.bf16.mxu0 0
        %960 = vmatpush1.bf16.msra.mxu0 %v798
        %961 = vmatprep.subr.bf16.mxu0 0
        %962 = vmatpush1.bf16.msra.mxu0 %v799
        %963 = vmatprep.subr.bf16.mxu0 0
        %964 = vmatpush1.bf16.msra.mxu0 %v800
        %965 = vmatprep.subr.bf16.mxu0 0
        %966 = vmatpush1.bf16.msra.mxu0 %v801
        %967 = vmatprep.subr.bf16.mxu0 0
        %968 = vmatpush1.bf16.msra.mxu0 %v802
        %969 = vmatprep.subr.bf16.mxu0 0
        %970 = vmatpush1.bf16.msra.mxu0 %v803
        %971 = vmatprep.subr.bf16.mxu0 0
        %972 = vmatpush1.bf16.msra.mxu0 %v804
        %973 = vmatprep.subr.bf16.mxu0 0
        %974 = vmatpush1.bf16.msra.mxu0 %v805
        %975 = vmatprep.subr.bf16.mxu0 0
        %976 = vmatpush1.bf16.msra.mxu0 %v806
        %977 = vmatprep.subr.bf16.mxu0 0
        %978 = vmatpush1.bf16.msra.mxu0 %v807
        %979 = vmatprep.subr.bf16.mxu0 0
        %980 = vmatpush1.bf16.msra.mxu0 %v808
        %981 = vmatprep.subr.bf16.mxu0 0
        %982 = vmatpush1.bf16.msra.mxu0 %v809
        %983 = vmatprep.subr.bf16.mxu0 0
        %984 = vmatpush1.bf16.msra.mxu0 %v810
        %985 = vmatprep.subr.bf16.mxu0 0
        %986 = vmatpush1.bf16.msra.mxu0 %v811
        %987 = vmatprep.subr.bf16.mxu0 0
        %988 = vmatpush1.bf16.msra.mxu0 %v812
        %989 = vmatprep.mubr.bf16.mxu0 %v421
        %990 = vmatmul.mubr.bf16.gmra.mrb[0].mxu0 %v420
        %v991 = vpop.f32.mrb[0].mxu0
        %v992 = vadd.f32 %v952, %v991
        %v993 = vpop.f32.mrb[0].mxu0
        %v994 = vpop.f32.mrb[0].mxu0
        %v995 = vpop.f32.mrb[0].mxu0
        %996 = vdwg.mxu0
        %997 = vmatprep.subr.bf16.mxu0 0
        %998 = vmatpush1.bf16.msra.mxu0 %v813
        %999 = vmatprep.subr.bf16.mxu0 0
        %1000 = vmatpush1.bf16.msra.mxu0 %v814
        %1001 = vmatprep.subr.bf16.mxu0 0
        %1002 = vmatpush1.bf16.msra.mxu0 %v815
        %1003 = vmatprep.subr.bf16.mxu0 0
        %1004 = vmatpush1.bf16.msra.mxu0 %v816
        %1005 = vmatprep.subr.bf16.mxu0 0
        %1006 = vmatpush1.bf16.msra.mxu0 %v817
        %1007 = vmatprep.subr.bf16.mxu0 0
        %1008 = vmatpush1.bf16.msra.mxu0 %v818
        %1009 = vmatprep.subr.bf16.mxu0 0
        %1010 = vmatpush1.bf16.msra.mxu0 %v819
        %1011 = vmatprep.subr.bf16.mxu0 0
        %1012 = vmatpush1.bf16.msra.mxu0 %v820
        %1013 = vmatprep.subr.bf16.mxu0 0
        %1014 = vmatpush1.bf16.msra.mxu0 0
        %1015 = vmatprep.subr.bf16.mxu0 0
        %1016 = vmatpush1.bf16.msra.mxu0 0
        %1017 = vmatprep.subr.bf16.mxu0 0
        %1018 = vmatpush1.bf16.msra.mxu0 0
        %1019 = vmatprep.subr.bf16.mxu0 0
        %1020 = vmatpush1.bf16.msra.mxu0 0
        %1021 = vmatprep.subr.bf16.mxu0 0
        %1022 = vmatpush1.bf16.msra.mxu0 0
        %1023 = vmatprep.subr.bf16.mxu0 0
        %1024 = vmatpush1.bf16.msra.mxu0 0
        %1025 = vmatprep.subr.bf16.mxu0 0
        %1026 = vmatpush1.bf16.msra.mxu0 0
        %1027 = vmatprep.subr.bf16.mxu0 0
        %1028 = vmatpush1.bf16.msra.mxu0 0
        %1029 = vmatprep.mubr.bf16.mxu0 0
        %1030 = vmatmul.mubr.bf16.gmra.mrb[0].mxu0 %v422
        %v1031 = vpop.f32.mrb[0].mxu0
        %v1032 = vadd.f32 %v992, %v1031
        %v1033 = vpop.f32.mrb[0].mxu0
        %v1034 = vpop.f32.mrb[0].mxu0
        %v1035 = vpop.f32.mrb[0].mxu0
        %1036 = vdwg.mxu0
        %v1037 = vmax.f32 %v1032, 0.0
        %v1038 = vpack.c.bf16 %v1037, %v1037
        %v1040 = vlaneseq
        %v1041 = vshrl.u32 %v1040, 7
        %v1042 = vsub.s32 0, %v1041
        %v1043 = vrot.slane %v403, %v1042
        %v1061 = vunpack.c.l.b16 %v338
        %v1062 = vunpack.c.l.b16 %v339
        %v1063 = vunpack.c.l.b16 %v340
        %v1064 = vunpack.c.l.b16 %v341
        %v1065 = vunpack.c.l.b16 %v342
        %v1066 = vunpack.c.l.b16 %v343
        %v1067 = vunpack.c.l.b16 %v344
        %v1068 = vunpack.c.l.b16 %v345
        %v1069 = vunpack.c.l.b16 %v346
        %v1070 = vunpack.c.l.b16 %v347
        %v1071 = vunpack.c.l.b16 %v348
        %v1072 = vunpack.c.l.b16 %v349
        %v1073 = vunpack.c.l.b16 %v350
        %v1074 = vunpack.c.l.b16 %v351
        %v1075 = vunpack.c.l.b16 %v352
        %v1076 = vunpack.c.l.b16 %v353
        %v1077 = vpack.c.b16 %v1062, %v1061
        %v1078 = vpack.c.b16 %v1064, %v1063
        %v1079 = vpack.c.b16 %v1066, %v1065
        %v1080 = vpack.c.b16 %v1068, %v1067
        %v1081 = vpack.c.b16 %v1070, %v1069
        %v1082 = vpack.c.b16 %v1072, %v1071
        %v1083 = vpack.c.b16 %v1074, %v1073
        %v1084 = vpack.c.b16 %v1076, %v1075
        %1093 = vmatprep.subr.bf16.mxu0 0
        %1094 = vmatpush1.bf16.msra.mxu0 %v1077
        %1095 = vmatprep.subr.bf16.mxu0 0
        %1096 = vmatpush1.bf16.msra.mxu0 %v1078
        %1097 = vmatprep.subr.bf16.mxu0 0
        %1098 = vmatpush1.bf16.msra.mxu0 %v1079
        %1099 = vmatprep.subr.bf16.mxu0 0
        %1100 = vmatpush1.bf16.msra.mxu0 %v1080
        %1101 = vmatprep.subr.bf16.mxu0 0
        %1102 = vmatpush1.bf16.msra.mxu0 %v1081
        %1103 = vmatprep.subr.bf16.mxu0 0
        %1104 = vmatpush1.bf16.msra.mxu0 %v1082
        %1105 = vmatprep.subr.bf16.mxu0 0
        %1106 = vmatpush1.bf16.msra.mxu0 %v1083
        %1107 = vmatprep.subr.bf16.mxu0 0
        %1108 = vmatpush1.bf16.msra.mxu0 %v1084
        %1109 = vmatprep.subr.bf16.mxu0 0
        %1110 = vmatpush1.bf16.msra.mxu0 0
        %1111 = vmatprep.subr.bf16.mxu0 0
        %1112 = vmatpush1.bf16.msra.mxu0 0
        %1113 = vmatprep.subr.bf16.mxu0 0
        %1114 = vmatpush1.bf16.msra.mxu0 0
        %1115 = vmatprep.subr.bf16.mxu0 0
        %1116 = vmatpush1.bf16.msra.mxu0 0
        %1117 = vmatprep.subr.bf16.mxu0 0
        %1118 = vmatpush1.bf16.msra.mxu0 0
        %1119 = vmatprep.subr.bf16.mxu0 0
        %1120 = vmatpush1.bf16.msra.mxu0 0
        %1121 = vmatprep.subr.bf16.mxu0 0
        %1122 = vmatpush1.bf16.msra.mxu0 0
        %1123 = vmatprep.subr.bf16.mxu0 0
        %1124 = vmatpush1.bf16.msra.mxu0 0
        %1125 = vmatprep.mubr.bf16.mxu0 0
        %1126 = vmatmul.mubr.bf16.gmra.mrb[0].mxu0 %v1038
        %v1127 = vpop.f32.mrb[0].mxu0
        %v1128 = vadd.f32 %v1043, %v1127
        %v1129 = vpop.f32.mrb[0].mxu0
        %v1130 = vpop.f32.mrb[0].mxu0
        %v1131 = vpop.f32.mrb[0].mxu0
        %1132 = vdwg.mxu0
        %v1133 = vmax.f32 %v1128, 0.0
        %v1134 = vpack.c.bf16 %v1133, %v1133
        %v1136 = vlaneseq
        %v1137 = vshrl.u32 %v1136, 7
        %v1138 = vsub.s32 0, %v1137
        %v1139 = vrot.slane %v404, %v1138
        %v1140 = vlaneseq
        %v1141 = vshrl.u32 %v1140, 7
        %v1142 = vsub.s32 1, %v1141
        %v1143 = vrot.slane %v404, %v1142
        %v1162 = vunpack.c.l.b16 %v354
        %v1163 = vunpack.c.h.b16 %v354
        %v1164 = vunpack.c.l.b16 %v355
        %v1165 = vunpack.c.h.b16 %v355
        %v1166 = vunpack.c.l.b16 %v356
        %v1167 = vunpack.c.h.b16 %v356
        %v1168 = vunpack.c.l.b16 %v357
        %v1169 = vunpack.c.h.b16 %v357
        %v1170 = vunpack.c.l.b16 %v358
        %v1171 = vunpack.c.h.b16 %v358
        %v1172 = vunpack.c.l.b16 %v359
        %v1173 = vunpack.c.h.b16 %v359
        %v1174 = vunpack.c.l.b16 %v360
        %v1175 = vunpack.c.h.b16 %v360
        %v1176 = vunpack.c.l.b16 %v361
        %v1177 = vunpack.c.h.b16 %v361
        %v1178 = vunpack.c.l.b16 %v362
        %v1179 = vunpack.c.h.b16 %v362
        %v1180 = vunpack.c.l.b16 %v363
        %v1181 = vunpack.c.h.b16 %v363
        %v1182 = vunpack.c.l.b16 %v364
        %v1183 = vunpack.c.h.b16 %v364
        %v1184 = vunpack.c.l.b16 %v365
        %v1185 = vunpack.c.h.b16 %v365
        %v1186 = vunpack.c.l.b16 %v366
        %v1187 = vunpack.c.h.b16 %v366
        %v1188 = vunpack.c.l.b16 %v367
        %v1189 = vunpack.c.h.b16 %v367
        %v1190 = vunpack.c.l.b16 %v368
        %v1191 = vunpack.c.h.b16 %v368
        %v1192 = vunpack.c.l.b16 %v369
        %v1193 = vunpack.c.h.b16 %v369
        %v1194 = vpack.c.b16 %v1164, %v1162
        %v1195 = vpack.c.b16 %v1165, %v1163
        %v1196 = vpack.c.b16 %v1168, %v1166
        %v1197 = vpack.c.b16 %v1169, %v1167
        %v1198 = vpack.c.b16 %v1172, %v1170
        %v1199 = vpack.c.b16 %v1173, %v1171
        %v1200 = vpack.c.b16 %v1176, %v1174
        %v1201 = vpack.c.b16 %v1177, %v1175
        %v1202 = vpack.c.b16 %v1180, %v1178
        %v1203 = vpack.c.b16 %v1181, %v1179
        %v1204 = vpack.c.b16 %v1184, %v1182
        %v1205 = vpack.c.b16 %v1185, %v1183
        %v1206 = vpack.c.b16 %v1188, %v1186
        %v1207 = vpack.c.b16 %v1189, %v1187
        %v1208 = vpack.c.b16 %v1192, %v1190
        %v1209 = vpack.c.b16 %v1193, %v1191
        %1226 = vmatprep.subr.bf16.mxu0 %v1195
        %1227 = vmatpush1.bf16.msra.mxu0 %v1194
        %1228 = vmatprep.subr.bf16.mxu0 %v1197
        %1229 = vmatpush1.bf16.msra.mxu0 %v1196
        %1230 = vmatprep.subr.bf16.mxu0 %v1199
        %1231 = vmatpush1.bf16.msra.mxu0 %v1198
        %1232 = vmatprep.subr.bf16.mxu0 %v1201
        %1233 = vmatpush1.bf16.msra.mxu0 %v1200
        %1234 = vmatprep.subr.bf16.mxu0 %v1203
        %1235 = vmatpush1.bf16.msra.mxu0 %v1202
        %1236 = vmatprep.subr.bf16.mxu0 %v1205
        %1237 = vmatpush1.bf16.msra.mxu0 %v1204
        %1238 = vmatprep.subr.bf16.mxu0 %v1207
        %1239 = vmatpush1.bf16.msra.mxu0 %v1206
        %1240 = vmatprep.subr.bf16.mxu0 %v1209
        %1241 = vmatpush1.bf16.msra.mxu0 %v1208
        %1242 = vmatprep.subr.bf16.mxu0 0
        %1243 = vmatpush1.bf16.msra.mxu0 0
        %1244 = vmatprep.subr.bf16.mxu0 0
        %1245 = vmatpush1.bf16.msra.mxu0 0
        %1246 = vmatprep.subr.bf16.mxu0 0
        %1247 = vmatpush1.bf16.msra.mxu0 0
        %1248 = vmatprep.subr.bf16.mxu0 0
        %1249 = vmatpush1.bf16.msra.mxu0 0
        %1250 = vmatprep.subr.bf16.mxu0 0
        %1251 = vmatpush1.bf16.msra.mxu0 0
        %1252 = vmatprep.subr.bf16.mxu0 0
        %1253 = vmatpush1.bf16.msra.mxu0 0
        %1254 = vmatprep.subr.bf16.mxu0 0
        %1255 = vmatpush1.bf16.msra.mxu0 0
        %1256 = vmatprep.subr.bf16.mxu0 0
        %1257 = vmatpush1.bf16.msra.mxu0 0
        %1258 = vmatprep.mubr.bf16.mxu0 0
        %1259 = vmatmul.mubr.bf16.gmra.mrb[0].mxu0 %v1134
        %v1260 = vpop.f32.mrb[0].mxu0
        %v1261 = vadd.f32 %v1139, %v1260
        %v1262 = vpop.f32.mrb[0].mxu0
        %v1263 = vadd.f32 %v1143, %v1262
        %v1264 = vpop.f32.mrb[0].mxu0
        %v1265 = vpop.f32.mrb[0].mxu0
        %1266 = vdwg.mxu0
        %vm1267 = vcmp.gt.f32.partialorder %v1263, 20.0
        %v1268 = vmin.f32 %v1263, 20.0
        %v1269 = vmul.f32 %v1268, 1.442695
        %v1270 = vpow.pop %v1269
        %v1271 = vadd.f32 %v1270, 1.0
        %v1272 = vlog2.pop %v1271
        %v1273 = vmul.f32 %v1272, 0.6931472
        %v1274 = vsel %vm1267, %v1263, %v1273
        %v1275 = vrsqrt.pop %v1274
        %v1276 = vmul.f32 %v1274, %v1275
        %vm1277 = vcmp.eq.f32.partialorder %v1274, inf
        %v1278 = vsel %vm1277, %v1274, %v1276
        %vm1279 = vcmp.eq.f32.partialorder %v1274, 0.0
        %v1280 = vand.u32 %v1274, 2147483648
        %v1281 = vsel %vm1279, %v1280, %v1278
        %v1282 = vmul.f32 %v415, %v1281
        %v1283 = vadd.f32 %v1282, %v1261
        %v1284 = vpack.c.bf16 %v1283, %v1283
        %v1286 = vlaneseq
        %v1287 = vshrl.u32 %v1286, 7
        %v1288 = vsub.s32 0, %v1287
        %v1289 = vrot.slane %v405, %v1288
        %v1307 = vunpack.c.l.b16 %v370
        %v1308 = vunpack.c.l.b16 %v371
        %v1309 = vunpack.c.l.b16 %v372
        %v1310 = vunpack.c.l.b16 %v373
        %v1311 = vunpack.c.l.b16 %v374
        %v1312 = vunpack.c.l.b16 %v375
        %v1313 = vunpack.c.l.b16 %v376
        %v1314 = vunpack.c.l.b16 %v377
        %v1315 = vunpack.c.l.b16 %v378
        %v1316 = vunpack.c.l.b16 %v379
        %v1317 = vunpack.c.l.b16 %v380
        %v1318 = vunpack.c.l.b16 %v381
        %v1319 = vunpack.c.l.b16 %v382
        %v1320 = vunpack.c.l.b16 %v383
        %v1321 = vunpack.c.l.b16 %v384
        %v1322 = vunpack.c.l.b16 %v385
        %v1323 = vpack.c.b16 %v1308, %v1307
        %v1324 = vpack.c.b16 %v1310, %v1309
        %v1325 = vpack.c.b16 %v1312, %v1311
        %v1326 = vpack.c.b16 %v1314, %v1313
        %v1327 = vpack.c.b16 %v1316, %v1315
        %v1328 = vpack.c.b16 %v1318, %v1317
        %v1329 = vpack.c.b16 %v1320, %v1319
        %v1330 = vpack.c.b16 %v1322, %v1321
        %1339 = vmatprep.subr.bf16.mxu0 0
        %1340 = vmatpush1.bf16.msra.mxu0 %v1323
        %1341 = vmatprep.subr.bf16.mxu0 0
        %1342 = vmatpush1.bf16.msra.mxu0 %v1324
        %1343 = vmatprep.subr.bf16.mxu0 0
        %1344 = vmatpush1.bf16.msra.mxu0 %v1325
        %1345 = vmatprep.subr.bf16.mxu0 0
        %1346 = vmatpush1.bf16.msra.mxu0 %v1326
        %1347 = vmatprep.subr.bf16.mxu0 0
        %1348 = vmatpush1.bf16.msra.mxu0 %v1327
        %1349 = vmatprep.subr.bf16.mxu0 0
        %1350 = vmatpush1.bf16.msra.mxu0 %v1328
        %1351 = vmatprep.subr.bf16.mxu0 0
        %1352 = vmatpush1.bf16.msra.mxu0 %v1329
        %1353 = vmatprep.subr.bf16.mxu0 0
        %1354 = vmatpush1.bf16.msra.mxu0 %v1330
        %1355 = vmatprep.subr.bf16.mxu0 0
        %1356 = vmatpush1.bf16.msra.mxu0 0
        %1357 = vmatprep.subr.bf16.mxu0 0
        %1358 = vmatpush1.bf16.msra.mxu0 0
        %1359 = vmatprep.subr.bf16.mxu0 0
        %1360 = vmatpush1.bf16.msra.mxu0 0
        %1361 = vmatprep.subr.bf16.mxu0 0
        %1362 = vmatpush1.bf16.msra.mxu0 0
        %1363 = vmatprep.subr.bf16.mxu0 0
        %1364 = vmatpush1.bf16.msra.mxu0 0
        %1365 = vmatprep.subr.bf16.mxu0 0
        %1366 = vmatpush1.bf16.msra.mxu0 0
        %1367 = vmatprep.subr.bf16.mxu0 0
        %1368 = vmatpush1.bf16.msra.mxu0 0
        %1369 = vmatprep.subr.bf16.mxu0 0
        %1370 = vmatpush1.bf16.msra.mxu0 0
        %1371 = vmatprep.mubr.bf16.mxu0 0
        %1372 = vmatmul.mubr.bf16.gmra.mrb[0].mxu0 %v1284
        %v1373 = vpop.f32.mrb[0].mxu0
        %v1374 = vadd.f32 %v1289, %v1373
        %v1375 = vpop.f32.mrb[0].mxu0
        %v1376 = vpop.f32.mrb[0].mxu0
        %v1377 = vpop.f32.mrb[0].mxu0
        %1378 = vdwg.mxu0
        %v1379 = vmax.f32 %v1374, 0.0
        %v1380 = vpack.c.bf16 %v1379, %v1379
        %v1382 = vlaneseq
        %v1383 = vshrl.u32 %v1382, 7
        %v1384 = vsub.s32 0, %v1383
        %v1385 = vrot.slane %v406, %v1384
        %v1403 = vunpack.c.l.b16 %v386
        %v1404 = vunpack.c.l.b16 %v387
        %v1405 = vunpack.c.l.b16 %v388
        %v1406 = vunpack.c.l.b16 %v389
        %v1407 = vunpack.c.l.b16 %v390
        %v1408 = vunpack.c.l.b16 %v391
        %v1409 = vunpack.c.l.b16 %v392
        %v1410 = vunpack.c.l.b16 %v393
        %v1411 = vunpack.c.l.b16 %v394
        %v1412 = vunpack.c.l.b16 %v395
        %v1413 = vunpack.c.l.b16 %v396
        %v1414 = vunpack.c.l.b16 %v397
        %v1415 = vunpack.c.l.b16 %v398
        %v1416 = vunpack.c.l.b16 %v399
        %v1417 = vunpack.c.l.b16 %v400
        %v1418 = vunpack.c.l.b16 %v401
        %v1419 = vpack.c.b16 %v1404, %v1403
        %v1420 = vpack.c.b16 %v1406, %v1405
        %v1421 = vpack.c.b16 %v1408, %v1407
        %v1422 = vpack.c.b16 %v1410, %v1409
        %v1423 = vpack.c.b16 %v1412, %v1411
        %v1424 = vpack.c.b16 %v1414, %v1413
        %v1425 = vpack.c.b16 %v1416, %v1415
        %v1426 = vpack.c.b16 %v1418, %v1417
        %1435 = vmatprep.subr.bf16.mxu0 0
        %1436 = vmatpush1.bf16.msra.mxu0 %v1419
        %1437 = vmatprep.subr.bf16.mxu0 0
        %1438 = vmatpush1.bf16.msra.mxu0 %v1420
        %1439 = vmatprep.subr.bf16.mxu0 0
        %1440 = vmatpush1.bf16.msra.mxu0 %v1421
        %1441 = vmatprep.subr.bf16.mxu0 0
        %1442 = vmatpush1.bf16.msra.mxu0 %v1422
        %1443 = vmatprep.subr.bf16.mxu0 0
        %1444 = vmatpush1.bf16.msra.mxu0 %v1423
        %1445 = vmatprep.subr.bf16.mxu0 0
        %1446 = vmatpush1.bf16.msra.mxu0 %v1424
        %1447 = vmatprep.subr.bf16.mxu0 0
        %1448 = vmatpush1.bf16.msra.mxu0 %v1425
        %1449 = vmatprep.subr.bf16.mxu0 0
        %1450 = vmatpush1.bf16.msra.mxu0 %v1426
        %1451 = vmatprep.subr.bf16.mxu0 0
        %1452 = vmatpush1.bf16.msra.mxu0 0
        %1453 = vmatprep.subr.bf16.mxu0 0
        %1454 = vmatpush1.bf16.msra.mxu0 0
        %1455 = vmatprep.subr.bf16.mxu0 0
        %1456 = vmatpush1.bf16.msra.mxu0 0
        %1457 = vmatprep.subr.bf16.mxu0 0
        %1458 = vmatpush1.bf16.msra.mxu0 0
        %1459 = vmatprep.subr.bf16.mxu0 0
        %1460 = vmatpush1.bf16.msra.mxu0 0
        %1461 = vmatprep.subr.bf16.mxu0 0
        %1462 = vmatpush1.bf16.msra.mxu0 0
        %1463 = vmatprep.subr.bf16.mxu0 0
        %1464 = vmatpush1.bf16.msra.mxu0 0
        %1465 = vmatprep.subr.bf16.mxu0 0
        %1466 = vmatpush1.bf16.msra.mxu0 0
        %1467 = vmatprep.mubr.bf16.mxu0 0
        %1468 = vmatmul.mubr.bf16.gmra.mrb[0].mxu0 %v1380
        %v1469 = vpop.f32.mrb[0].mxu0
        %v1470 = vadd.f32 %v1385, %v1469
        %v1471 = vpop.f32.mrb[0].mxu0
        %v1472 = vpop.f32.mrb[0].mxu0
        %v1473 = vpop.f32.mrb[0].mxu0
        %1474 = vdwg.mxu0
        %v1475 = vmax.f32 %v1470, 0.0
        %v1476 = vpack.c.bf16 %v1475, %v1475
        %v1477 = vld [vmem:[#allocation5] sm:$0xff]
        %v1478 = vld [vmem:[#allocation5 + $0x8] sm:$0xff]
        %v1479 = vld [vmem:[#allocation5 + $0x10] sm:$0xff]
        %v1480 = vld [vmem:[#allocation5 + $0x18] sm:$0xf]
        %v1481 = vld [vmem:[#allocation5 + $0x1c] sm:$0xff]
        %v1482 = vld [vmem:[#allocation5 + $0x24] sm:$0xff]
        %v1483 = vld [vmem:[#allocation5 + $0x2c] sm:$0xff]
        %v1484 = vld [vmem:[#allocation5 + $0x34] sm:$0xf]
        %v1485 = vld [vmem:[#allocation5 + $0x38] sm:$0xff]
        %v1486 = vld [vmem:[#allocation5 + $0x40] sm:$0xff]
        %v1487 = vld [vmem:[#allocation5 + $0x48] sm:$0xff]
        %v1488 = vld [vmem:[#allocation5 + $0x50] sm:$0xf]
        %v1489 = vld [vmem:[#allocation5 + $0x54] sm:$0xff]
        %v1490 = vld [vmem:[#allocation5 + $0x5c] sm:$0xff]
        %v1491 = vld [vmem:[#allocation5 + $0x64] sm:$0xff]
        %v1492 = vld [vmem:[#allocation5 + $0x6c] sm:$0xf]
        %v1493 = vld [vmem:[#allocation5 + $0x70] sm:$0xff]
        %v1494 = vld [vmem:[#allocation5 + $0x78] sm:$0xff]
        %v1495 = vld [vmem:[#allocation5 + $0x80] sm:$0xff]
        %v1496 = vld [vmem:[#allocation5 + $0x88] sm:$0xf]
        %v1497 = vld [vmem:[#allocation5 + $0x8c] sm:$0xff]
        %v1498 = vld [vmem:[#allocation5 + $0x94] sm:$0xff]
        %v1499 = vld [vmem:[#allocation5 + $0x9c] sm:$0xff]
        %v1500 = vld [vmem:[#allocation5 + $0xa4] sm:$0xf]
        %v1501 = vld [vmem:[#allocation5 + $0xa8] sm:$0xff]
        %v1502 = vld [vmem:[#allocation5 + $0xb0] sm:$0xff]
        %v1503 = vld [vmem:[#allocation5 + $0xb8] sm:$0xff]
        %v1504 = vld [vmem:[#allocation5 + $0xc0] sm:$0xf]
        %v1505 = vld [vmem:[#allocation5 + $0xc4] sm:$0xff]
        %v1506 = vld [vmem:[#allocation5 + $0xcc] sm:$0xff]
        %v1507 = vld [vmem:[#allocation5 + $0xd4] sm:$0xff]
        %v1508 = vld [vmem:[#allocation5 + $0xdc] sm:$0xf]
        %v1509 = vld [vmem:[#allocation5 + $0xe0] sm:$0xff]
        %v1510 = vld [vmem:[#allocation5 + $0xe8] sm:$0xff]
        %v1511 = vld [vmem:[#allocation5 + $0xf0] sm:$0xff]
        %v1512 = vld [vmem:[#allocation5 + $0xf8] sm:$0xf]
        %v1513 = vld [vmem:[#allocation5 + $0xfc] sm:$0xff]
        %v1514 = vld [vmem:[#allocation5 + $0x104] sm:$0xff]
        %v1515 = vld [vmem:[#allocation5 + $0x10c] sm:$0xff]
        %v1516 = vld [vmem:[#allocation5 + $0x114] sm:$0xf]
        %v1517 = vld [vmem:[#allocation5 + $0x118] sm:$0xff]
        %v1518 = vld [vmem:[#allocation5 + $0x120] sm:$0xff]
        %v1519 = vld [vmem:[#allocation5 + $0x128] sm:$0xff]
        %v1520 = vld [vmem:[#allocation5 + $0x130] sm:$0xf]
        %v1521 = vld [vmem:[#allocation5 + $0x134] sm:$0xff]
        %v1522 = vld [vmem:[#allocation5 + $0x13c] sm:$0xff]
        %v1523 = vld [vmem:[#allocation5 + $0x144] sm:$0xff]
        %v1524 = vld [vmem:[#allocation5 + $0x14c] sm:$0xf]
        %v1525 = vld [vmem:[#allocation5 + $0x150] sm:$0xff]
        %v1526 = vld [vmem:[#allocation5 + $0x158] sm:$0xff]
        %v1527 = vld [vmem:[#allocation5 + $0x160] sm:$0xff]
        %v1528 = vld [vmem:[#allocation5 + $0x168] sm:$0xf]
        %v1529 = vld [vmem:[#allocation5 + $0x16c] sm:$0xff]
        %v1530 = vld [vmem:[#allocation5 + $0x174] sm:$0xff]
        %v1531 = vld [vmem:[#allocation5 + $0x17c] sm:$0xff]
        %v1532 = vld [vmem:[#allocation5 + $0x184] sm:$0xf]
        %v1533 = vld [vmem:[#allocation5 + $0x188] sm:$0xff]
        %v1534 = vld [vmem:[#allocation5 + $0x190] sm:$0xff]
        %v1535 = vld [vmem:[#allocation5 + $0x198] sm:$0xff]
        %v1536 = vld [vmem:[#allocation5 + $0x1a0] sm:$0xf]
        %v1537 = vld [vmem:[#allocation5 + $0x1a4] sm:$0xff]
        %v1538 = vld [vmem:[#allocation5 + $0x1ac] sm:$0xff]
        %v1539 = vld [vmem:[#allocation5 + $0x1b4] sm:$0xff]
        %v1540 = vld [vmem:[#allocation5 + $0x1bc] sm:$0xf]
        %v1542 = vlaneseq
        %v1543 = vshrl.u32 %v1542, 7
        %v1544 = vsub.s32 0, %v1543
        %v1545 = vrot.slane %v407, %v1544
        %v1546 = vlaneseq
        %v1547 = vshrl.u32 %v1546, 7
        %v1548 = vsub.s32 1, %v1547
        %v1549 = vrot.slane %v407, %v1548
        %v1550 = vlaneseq
        %v1551 = vshrl.u32 %v1550, 7
        %v1552 = vsub.s32 2, %v1551
        %v1553 = vrot.slane %v407, %v1552
        %v1554 = vlaneseq
        %v1555 = vshrl.u32 %v1554, 7
        %v1556 = vsub.s32 3, %v1555
        %v1557 = vrot.slane %v407, %v1556
        %v1558 = vlaneseq
        %v1559 = vshrl.u32 %v1558, 7
        %v1560 = vsub.s32 4, %v1559
        %v1561 = vrot.slane %v407, %v1560
        %v1562 = vlaneseq
        %v1563 = vshrl.u32 %v1562, 7
        %v1564 = vsub.s32 5, %v1563
        %v1565 = vrot.slane %v407, %v1564
        %v1566 = vlaneseq
        %v1567 = vshrl.u32 %v1566, 7
        %v1568 = vsub.s32 6, %v1567
        %v1569 = vrot.slane %v407, %v1568
        %v1641 = vunpack.c.l.b16 %v1477
        %v1642 = vunpack.c.h.b16 %v1477
        %v1643 = vunpack.c.l.b16 %v1478
        %v1644 = vunpack.c.h.b16 %v1478
        %v1645 = vunpack.c.l.b16 %v1479
        %v1646 = vunpack.c.h.b16 %v1479
        %v1647 = vunpack.c.l.b16 %v1480
        %v1648 = vunpack.c.l.b16 %v1481
        %v1649 = vunpack.c.h.b16 %v1481
        %v1650 = vunpack.c.l.b16 %v1482
        %v1651 = vunpack.c.h.b16 %v1482
        %v1652 = vunpack.c.l.b16 %v1483
        %v1653 = vunpack.c.h.b16 %v1483
        %v1654 = vunpack.c.l.b16 %v1484
        %v1655 = vunpack.c.l.b16 %v1485
        %v1656 = vunpack.c.h.b16 %v1485
        %v1657 = vunpack.c.l.b16 %v1486
        %v1658 = vunpack.c.h.b16 %v1486
        %v1659 = vunpack.c.l.b16 %v1487
        %v1660 = vunpack.c.h.b16 %v1487
        %v1661 = vunpack.c.l.b16 %v1488
        %v1662 = vunpack.c.l.b16 %v1489
        %v1663 = vunpack.c.h.b16 %v1489
        %v1664 = vunpack.c.l.b16 %v1490
        %v1665 = vunpack.c.h.b16 %v1490
        %v1666 = vunpack.c.l.b16 %v1491
        %v1667 = vunpack.c.h.b16 %v1491
        %v1668 = vunpack.c.l.b16 %v1492
        %v1669 = vunpack.c.l.b16 %v1493
        %v1670 = vunpack.c.h.b16 %v1493
        %v1671 = vunpack.c.l.b16 %v1494
        %v1672 = vunpack.c.h.b16 %v1494
        %v1673 = vunpack.c.l.b16 %v1495
        %v1674 = vunpack.c.h.b16 %v1495
        %v1675 = vunpack.c.l.b16 %v1496
        %v1676 = vunpack.c.l.b16 %v1497
        %v1677 = vunpack.c.h.b16 %v1497
        %v1678 = vunpack.c.l.b16 %v1498
        %v1679 = vunpack.c.h.b16 %v1498
        %v1680 = vunpack.c.l.b16 %v1499
        %v1681 = vunpack.c.h.b16 %v1499
        %v1682 = vunpack.c.l.b16 %v1500
        %v1683 = vunpack.c.l.b16 %v1501
        %v1684 = vunpack.c.h.b16 %v1501
        %v1685 = vunpack.c.l.b16 %v1502
        %v1686 = vunpack.c.h.b16 %v1502
        %v1687 = vunpack.c.l.b16 %v1503
        %v1688 = vunpack.c.h.b16 %v1503
        %v1689 = vunpack.c.l.b16 %v1504
        %v1690 = vunpack.c.l.b16 %v1505
        %v1691 = vunpack.c.h.b16 %v1505
        %v1692 = vunpack.c.l.b16 %v1506
        %v1693 = vunpack.c.h.b16 %v1506
        %v1694 = vunpack.c.l.b16 %v1507
        %v1695 = vunpack.c.h.b16 %v1507
        %v1696 = vunpack.c.l.b16 %v1508
        %v1697 = vunpack.c.l.b16 %v1509
        %v1698 = vunpack.c.h.b16 %v1509
        %v1699 = vunpack.c.l.b16 %v1510
        %v1700 = vunpack.c.h.b16 %v1510
        %v1701 = vunpack.c.l.b16 %v1511
        %v1702 = vunpack.c.h.b16 %v1511
        %v1703 = vunpack.c.l.b16 %v1512
        %v1704 = vunpack.c.l.b16 %v1513
        %v1705 = vunpack.c.h.b16 %v1513
        %v1706 = vunpack.c.l.b16 %v1514
        %v1707 = vunpack.c.h.b16 %v1514
        %v1708 = vunpack.c.l.b16 %v1515
        %v1709 = vunpack.c.h.b16 %v1515
        %v1710 = vunpack.c.l.b16 %v1516
        %v1711 = vunpack.c.l.b16 %v1517
        %v1712 = vunpack.c.h.b16 %v1517
        %v1713 = vunpack.c.l.b16 %v1518
        %v1714 = vunpack.c.h.b16 %v1518
        %v1715 = vunpack.c.l.b16 %v1519
        %v1716 = vunpack.c.h.b16 %v1519
        %v1717 = vunpack.c.l.b16 %v1520
        %v1718 = vunpack.c.l.b16 %v1521
        %v1719 = vunpack.c.h.b16 %v1521
        %v1720 = vunpack.c.l.b16 %v1522
        %v1721 = vunpack.c.h.b16 %v1522
        %v1722 = vunpack.c.l.b16 %v1523
        %v1723 = vunpack.c.h.b16 %v1523
        %v1724 = vunpack.c.l.b16 %v1524
        %v1725 = vunpack.c.l.b16 %v1525
        %v1726 = vunpack.c.h.b16 %v1525
        %v1727 = vunpack.c.l.b16 %v1526
        %v1728 = vunpack.c.h.b16 %v1526
        %v1729 = vunpack.c.l.b16 %v1527
        %v1730 = vunpack.c.h.b16 %v1527
        %v1731 = vunpack.c.l.b16 %v1528
        %v1732 = vunpack.c.l.b16 %v1529
        %v1733 = vunpack.c.h.b16 %v1529
        %v1734 = vunpack.c.l.b16 %v1530
        %v1735 = vunpack.c.h.b16 %v1530
        %v1736 = vunpack.c.l.b16 %v1531
        %v1737 = vunpack.c.h.b16 %v1531
        %v1738 = vunpack.c.l.b16 %v1532
        %v1739 = vunpack.c.l.b16 %v1533
        %v1740 = vunpack.c.h.b16 %v1533
        %v1741 = vunpack.c.l.b16 %v1534
        %v1742 = vunpack.c.h.b16 %v1534
        %v1743 = vunpack.c.l.b16 %v1535
        %v1744 = vunpack.c.h.b16 %v1535
        %v1745 = vunpack.c.l.b16 %v1536
        %v1746 = vunpack.c.l.b16 %v1537
        %v1747 = vunpack.c.h.b16 %v1537
        %v1748 = vunpack.c.l.b16 %v1538
        %v1749 = vunpack.c.h.b16 %v1538
        %v1750 = vunpack.c.l.b16 %v1539
        %v1751 = vunpack.c.h.b16 %v1539
        %v1752 = vunpack.c.l.b16 %v1540
        %v1753 = vpack.c.b16 %v1648, %v1641
        %v1754 = vpack.c.b16 %v1649, %v1642
        %v1755 = vpack.c.b16 %v1650, %v1643
        %v1756 = vpack.c.b16 %v1651, %v1644
        %v1757 = vpack.c.b16 %v1652, %v1645
        %v1758 = vpack.c.b16 %v1653, %v1646
        %v1759 = vpack.c.b16 %v1654, %v1647
        %v1760 = vpack.c.b16 %v1662, %v1655
        %v1761 = vpack.c.b16 %v1663, %v1656
        %v1762 = vpack.c.b16 %v1664, %v1657
        %v1763 = vpack.c.b16 %v1665, %v1658
        %v1764 = vpack.c.b16 %v1666, %v1659
        %v1765 = vpack.c.b16 %v1667, %v1660
        %v1766 = vpack.c.b16 %v1668, %v1661
        %v1767 = vpack.c.b16 %v1676, %v1669
        %v1768 = vpack.c.b16 %v1677, %v1670
        %v1769 = vpack.c.b16 %v1678, %v1671
        %v1770 = vpack.c.b16 %v1679, %v1672
        %v1771 = vpack.c.b16 %v1680, %v1673
        %v1772 = vpack.c.b16 %v1681, %v1674
        %v1773 = vpack.c.b16 %v1682, %v1675
        %v1774 = vpack.c.b16 %v1690, %v1683
        %v1775 = vpack.c.b16 %v1691, %v1684
        %v1776 = vpack.c.b16 %v1692, %v1685
        %v1777 = vpack.c.b16 %v1693, %v1686
        %v1778 = vpack.c.b16 %v1694, %v1687
        %v1779 = vpack.c.b16 %v1695, %v1688
        %v1780 = vpack.c.b16 %v1696, %v1689
        %v1781 = vpack.c.b16 %v1704, %v1697
        %v1782 = vpack.c.b16 %v1705, %v1698
        %v1783 = vpack.c.b16 %v1706, %v1699
        %v1784 = vpack.c.b16 %v1707, %v1700
        %v1785 = vpack.c.b16 %v1708, %v1701
        %v1786 = vpack.c.b16 %v1709, %v1702
        %v1787 = vpack.c.b16 %v1710, %v1703
        %v1788 = vpack.c.b16 %v1718, %v1711
        %v1789 = vpack.c.b16 %v1719, %v1712
        %v1790 = vpack.c.b16 %v1720, %v1713
        %v1791 = vpack.c.b16 %v1721, %v1714
        %v1792 = vpack.c.b16 %v1722, %v1715
        %v1793 = vpack.c.b16 %v1723, %v1716
        %v1794 = vpack.c.b16 %v1724, %v1717
        %v1795 = vpack.c.b16 %v1732, %v1725
        %v1796 = vpack.c.b16 %v1733, %v1726
        %v1797 = vpack.c.b16 %v1734, %v1727
        %v1798 = vpack.c.b16 %v1735, %v1728
        %v1799 = vpack.c.b16 %v1736, %v1729
        %v1800 = vpack.c.b16 %v1737, %v1730
        %v1801 = vpack.c.b16 %v1738, %v1731
        %v1802 = vpack.c.b16 %v1746, %v1739
        %v1803 = vpack.c.b16 %v1747, %v1740
        %v1804 = vpack.c.b16 %v1748, %v1741
        %v1805 = vpack.c.b16 %v1749, %v1742
        %v1806 = vpack.c.b16 %v1750, %v1743
        %v1807 = vpack.c.b16 %v1751, %v1744
        %v1808 = vpack.c.b16 %v1752, %v1745
        %1865 = vmatprep.subr.bf16.mxu0 %v1754
        %1866 = vmatpush1.bf16.msra.mxu0 %v1753
        %1867 = vmatprep.subr.bf16.mxu0 %v1761
        %1868 = vmatpush1.bf16.msra.mxu0 %v1760
        %1869 = vmatprep.subr.bf16.mxu0 %v1768
        %1870 = vmatpush1.bf16.msra.mxu0 %v1767
        %1871 = vmatprep.subr.bf16.mxu0 %v1775
        %1872 = vmatpush1.bf16.msra.mxu0 %v1774
        %1873 = vmatprep.subr.bf16.mxu0 %v1782
        %1874 = vmatpush1.bf16.msra.mxu0 %v1781
        %1875 = vmatprep.subr.bf16.mxu0 %v1789
        %1876 = vmatpush1.bf16.msra.mxu0 %v1788
        %1877 = vmatprep.subr.bf16.mxu0 %v1796
        %1878 = vmatpush1.bf16.msra.mxu0 %v1795
        %1879 = vmatprep.subr.bf16.mxu0 %v1803
        %1880 = vmatpush1.bf16.msra.mxu0 %v1802
        %1881 = vmatprep.subr.bf16.mxu0 0
        %1882 = vmatpush1.bf16.msra.mxu0 0
        %1883 = vmatprep.subr.bf16.mxu0 0
        %1884 = vmatpush1.bf16.msra.mxu0 0
        %1885 = vmatprep.subr.bf16.mxu0 0
        %1886 = vmatpush1.bf16.msra.mxu0 0
        %1887 = vmatprep.subr.bf16.mxu0 0
        %1888 = vmatpush1.bf16.msra.mxu0 0
        %1889 = vmatprep.subr.bf16.mxu0 0
        %1890 = vmatpush1.bf16.msra.mxu0 0
        %1891 = vmatprep.subr.bf16.mxu0 0
        %1892 = vmatpush1.bf16.msra.mxu0 0
        %1893 = vmatprep.subr.bf16.mxu0 0
        %1894 = vmatpush1.bf16.msra.mxu0 0
        %1895 = vmatprep.subr.bf16.mxu0 0
        %1896 = vmatpush1.bf16.msra.mxu0 0
        %1897 = vmatprep.mubr.bf16.mxu0 0
        %1898 = vmatmul.mubr.bf16.gmra.mrb[0].mxu0 %v1476
        %v1899 = vpop.f32.mrb[0].mxu0
        %v1900 = vadd.f32 %v1545, %v1899
        %v1901 = vpop.f32.mrb[0].mxu0
        %v1902 = vadd.f32 %v1549, %v1901
        %v1903 = vpop.f32.mrb[0].mxu0
        %v1904 = vpop.f32.mrb[0].mxu0
        %1905 = vdwg.mxu0
        %1906 = vmatprep.subr.bf16.mxu0 %v1756
        %1907 = vmatpush1.bf16.msra.mxu0 %v1755
        %1908 = vmatprep.subr.bf16.mxu0 %v1763
        %1909 = vmatpush1.bf16.msra.mxu0 %v1762
        %1910 = vmatprep.subr.bf16.mxu0 %v1770
        %1911 = vmatpush1.bf16.msra.mxu0 %v1769
        %1912 = vmatprep.subr.bf16.mxu0 %v1777
        %1913 = vmatpush1.bf16.msra.mxu0 %v1776
        %1914 = vmatprep.subr.bf16.mxu0 %v1784
        %1915 = vmatpush1.bf16.msra.mxu0 %v1783
        %1916 = vmatprep.subr.bf16.mxu0 %v1791
        %1917 = vmatpush1.bf16.msra.mxu0 %v1790
        %1918 = vmatprep.subr.bf16.mxu0 %v1798
        %1919 = vmatpush1.bf16.msra.mxu0 %v1797
        %1920 = vmatprep.subr.bf16.mxu0 %v1805
        %1921 = vmatpush1.bf16.msra.mxu0 %v1804
        %1922 = vmatprep.subr.bf16.mxu0 0
        %1923 = vmatpush1.bf16.msra.mxu0 0
        %1924 = vmatprep.subr.bf16.mxu0 0
        %1925 = vmatpush1.bf16.msra.mxu0 0
        %1926 = vmatprep.subr.bf16.mxu0 0
        %1927 = vmatpush1.bf16.msra.mxu0 0
        %1928 = vmatprep.subr.bf16.mxu0 0
        %1929 = vmatpush1.bf16.msra.mxu0 0
        %1930 = vmatprep.subr.bf16.mxu0 0
        %1931 = vmatpush1.bf16.msra.mxu0 0
        %1932 = vmatprep.subr.bf16.mxu0 0
        %1933 = vmatpush1.bf16.msra.mxu0 0
        %1934 = vmatprep.subr.bf16.mxu0 0
        %1935 = vmatpush1.bf16.msra.mxu0 0
        %1936 = vmatprep.subr.bf16.mxu0 0
        %1937 = vmatpush1.bf16.msra.mxu0 0
        %1938 = vmatprep.mubr.bf16.mxu0 0
        %1939 = vmatmul.mubr.bf16.gmra.mrb[0].mxu0 %v1476
        %v1940 = vpop.f32.mrb[0].mxu0
        %v1941 = vadd.f32 %v1553, %v1940
        %v1942 = vpop.f32.mrb[0].mxu0
        %v1943 = vadd.f32 %v1557, %v1942
        %v1944 = vpop.f32.mrb[0].mxu0
        %v1945 = vpop.f32.mrb[0].mxu0
        %1946 = vdwg.mxu0
        %1947 = vmatprep.subr.bf16.mxu0 %v1758
        %1948 = vmatpush1.bf16.msra.mxu0 %v1757
        %1949 = vmatprep.subr.bf16.mxu0 %v1765
        %1950 = vmatpush1.bf16.msra.mxu0 %v1764
        %1951 = vmatprep.subr.bf16.mxu0 %v1772
        %1952 = vmatpush1.bf16.msra.mxu0 %v1771
        %1953 = vmatprep.subr.bf16.mxu0 %v1779
        %1954 = vmatpush1.bf16.msra.mxu0 %v1778
        %1955 = vmatprep.subr.bf16.mxu0 %v1786
        %1956 = vmatpush1.bf16.msra.mxu0 %v1785
        %1957 = vmatprep.subr.bf16.mxu0 %v1793
        %1958 = vmatpush1.bf16.msra.mxu0 %v1792
        %1959 = vmatprep.subr.bf16.mxu0 %v1800
        %1960 = vmatpush1.bf16.msra.mxu0 %v1799
        %1961 = vmatprep.subr.bf16.mxu0 %v1807
        %1962 = vmatpush1.bf16.msra.mxu0 %v1806
        %1963 = vmatprep.subr.bf16.mxu0 0
        %1964 = vmatpush1.bf16.msra.mxu0 0
        %1965 = vmatprep.subr.bf16.mxu0 0
        %1966 = vmatpush1.bf16.msra.mxu0 0
        %1967 = vmatprep.subr.bf16.mxu0 0
        %1968 = vmatpush1.bf16.msra.mxu0 0
        %1969 = vmatprep.subr.bf16.mxu0 0
        %1970 = vmatpush1.bf16.msra.mxu0 0
        %1971 = vmatprep.subr.bf16.mxu0 0
        %1972 = vmatpush1.bf16.msra.mxu0 0
        %1973 = vmatprep.subr.bf16.mxu0 0
        %1974 = vmatpush1.bf16.msra.mxu0 0
        %1975 = vmatprep.subr.bf16.mxu0 0
        %1976 = vmatpush1.bf16.msra.mxu0 0
        %1977 = vmatprep.subr.bf16.mxu0 0
        %1978 = vmatpush1.bf16.msra.mxu0 0
        %1979 = vmatprep.mubr.bf16.mxu0 0
        %1980 = vmatmul.mubr.bf16.gmra.mrb[0].mxu0 %v1476
        %v1981 = vpop.f32.mrb[0].mxu0
        %v1982 = vadd.f32 %v1561, %v1981
        %v1983 = vpop.f32.mrb[0].mxu0
        %v1984 = vadd.f32 %v1565, %v1983
        %v1985 = vpop.f32.mrb[0].mxu0
        %v1986 = vpop.f32.mrb[0].mxu0
        %1987 = vdwg.mxu0
        %1988 = vmatprep.subr.bf16.mxu0 0
        %1989 = vmatpush1.bf16.msra.mxu0 %v1759
        %1990 = vmatprep.subr.bf16.mxu0 0
        %1991 = vmatpush1.bf16.msra.mxu0 %v1766
        %1992 = vmatprep.subr.bf16.mxu0 0
        %1993 = vmatpush1.bf16.msra.mxu0 %v1773
        %1994 = vmatprep.subr.bf16.mxu0 0
        %1995 = vmatpush1.bf16.msra.mxu0 %v1780
        %1996 = vmatprep.subr.bf16.mxu0 0
        %1997 = vmatpush1.bf16.msra.mxu0 %v1787
        %1998 = vmatprep.subr.bf16.mxu0 0
        %1999 = vmatpush1.bf16.msra.mxu0 %v1794
        %2000 = vmatprep.subr.bf16.mxu0 0
        %2001 = vmatpush1.bf16.msra.mxu0 %v1801
        %2002 = vmatprep.subr.bf16.mxu0 0
        %2003 = vmatpush1.bf16.msra.mxu0 %v1808
        %2004 = vmatprep.subr.bf16.mxu0 0
        %2005 = vmatpush1.bf16.msra.mxu0 0
        %2006 = vmatprep.subr.bf16.mxu0 0
        %2007 = vmatpush1.bf16.msra.mxu0 0
        %2008 = vmatprep.subr.bf16.mxu0 0
        %2009 = vmatpush1.bf16.msra.mxu0 0
        %2010 = vmatprep.subr.bf16.mxu0 0
        %2011 = vmatpush1.bf16.msra.mxu0 0
        %2012 = vmatprep.subr.bf16.mxu0 0
        %2013 = vmatpush1.bf16.msra.mxu0 0
        %2014 = vmatprep.subr.bf16.mxu0 0
        %2015 = vmatpush1.bf16.msra.mxu0 0
        %2016 = vmatprep.subr.bf16.mxu0 0
        %2017 = vmatpush1.bf16.msra.mxu0 0
        %2018 = vmatprep.subr.bf16.mxu0 0
        %2019 = vmatpush1.bf16.msra.mxu0 0
        %2020 = vmatprep.mubr.bf16.mxu0 0
        %2021 = vmatmul.mubr.bf16.gmra.mrb[0].mxu0 %v1476
        %v2022 = vpop.f32.mrb[0].mxu0
        %v2023 = vadd.f32 %v1569, %v2022
        %v2024 = vpop.f32.mrb[0].mxu0
        %v2025 = vpop.f32.mrb[0].mxu0
        %v2026 = vpop.f32.mrb[0].mxu0
        %2027 = vdwg.mxu0
        %v2028 = vsub.f32 0.0, %v1900
        %v2029 = vsub.f32 0.0, %v1902
        %v2030 = vsub.f32 0.0, %v1941
        %v2031 = vsub.f32 0.0, %v1943
        %v2032 = vsub.f32 0.0, %v1982
        %v2033 = vsub.f32 0.0, %v1984
        %v2034 = vsub.f32 0.0, %v2023
        %v2035 = vmul.f32 %v2028, 1.442695
        %v2036 = vpow.pop %v2035
        %v2037 = vmul.f32 %v2029, 1.442695
        %v2038 = vpow.pop %v2037
        %v2039 = vmul.f32 %v2030, 1.442695
        %v2040 = vpow.pop %v2039
        %v2041 = vmul.f32 %v2031, 1.442695
        %v2042 = vpow.pop %v2041
        %v2043 = vmul.f32 %v2032, 1.442695
        %v2044 = vpow.pop %v2043
        %v2045 = vmul.f32 %v2033, 1.442695
        %v2046 = vpow.pop %v2045
        %v2047 = vmul.f32 %v2034, 1.442695
        %v2048 = vpow.pop %v2047
        %v2049 = vadd.f32 %v2036, 1.0
        %v2050 = vadd.f32 %v2038, 1.0
        %v2051 = vadd.f32 %v2040, 1.0
        %v2052 = vadd.f32 %v2042, 1.0
        %v2053 = vadd.f32 %v2044, 1.0
        %v2054 = vadd.f32 %v2046, 1.0
        %v2055 = vadd.f32 %v2048, 1.0
        %v2056 = vrcp.pop %v2049
        %v2057 = vrcp.pop %v2050
        %v2058 = vrcp.pop %v2051
        %v2059 = vrcp.pop %v2052
        %v2060 = vrcp.pop %v2053
        %v2061 = vrcp.pop %v2054
        %v2062 = vrcp.pop %v2055
        %2063 = vst [vmem:[%s315] sm:$0xff] %v2056
        %2064 = vst [vmem:[%s315 + $0x8] sm:$0xff] %v2057
        %2065 = vst [vmem:[%s315 + $0x10] sm:$0xff] %v2058
        %2066 = vst [vmem:[%s315 + $0x18] sm:$0xff] %v2059
        %2067 = vst [vmem:[%s315 + $0x20] sm:$0xff] %v2060
        %2068 = vst [vmem:[%s315 + $0x28] sm:$0xff] %v2061
        %2069 = vst [vmem:[%s315 + $0x30] sm:$0xff] %v2062
        %2070 = vst [vmem:[%s336] sm:$0xff] %v1261
        %2071 = vst [vmem:[%s336 + $0x8] sm:$0xff] %v1274
        %2072 = vst [vmem:[%s336 + $0x10] sm:$0xff] %v1283
        %s2073 = sand.u32 %s168, 1
        %s2074 = scalar_lea.sflag [#allocation4], %s2073
        %s2075 = sand.u32 %s168, 1
        %s2076 = smul.addr %s2075, 56
        %s2077 = scalar_lea.vmem [#allocation7], %s2076
        %p2078 = scmp.lt.s32.totalorder %s24, 1
        %s2079 = scalar_select %p2078, %s24, 1
        %s2080 = smul.addr %s2079, 3
        %s2081 = smul.addr %s2080, 8
        %s2082 = scalar_lea.vmem %s7, %s2081
        // Predicated region
        $region53: #{vae_forward.1} parent=43 // pred_check
          %p2083 = pneg %p178
        $region54: #{vae_forward.1} parent=43 // pred_check_branch
          %2085 = sbr.rel (%p2083) target = $region56
        $region55: #{vae_forward.1} parent=43 // pred_region
          %s2087 = ssub.s32 896, 896
          %2088 = vsyncadd %s2074, %s2087
          %s2089 = smul.addr %s24, 7
          %s2090 = smul.addr %s2089, 128
          %s2091 = scalar_lea.hbm %s6, %s2090
          %s2093 = sshll.u32 %s2077, 4
          %s2094 = int_to_ptr.vmem [resolvable:$true] %s2093
          %2096 = dma.vmem_to_hbm [thread:$0]  %s2094, 896, %s2091, %s2074
        $region56: #{vae_forward.1} parent=43 // pred_fallthru
          _
        // Predicated region
        $region57: #{vae_forward.1} parent=43 // pred_check
          %p2097 = pneg %p204
        $region58: #{vae_forward.1} parent=43 // pred_check_branch
          %2099 = sbr.rel (%p2097) target = $region60
        $region59: #{vae_forward.1} parent=43 // pred_region
          _
        $region60: #{vae_forward.1} parent=43 // pred_fallthru
          _
      $region44: #{vae_forward.1} parent=5 // pred_fallthru
        _
      %p2100 = scmp.le.s32.totalorder 2, %s19
      // Predicated region
      $region61: #{vae_forward.1} parent=5 // pred_check
        %p2101 = pneg %p2100
      $region62: #{vae_forward.1} parent=5 // pred_check_branch
        %2103 = sbr.rel (%p2101) target = $region64
      $region63: #{vae_forward.1} parent=5 // pred_region
        %s2104 = ssub.s32 %s19, 2
        // Predicated region
        $region65: #{vae_forward.1} parent=63 // pred_check
          %p2105 = pneg %p184
        $region66: #{vae_forward.1} parent=63 // pred_check_branch
          %2107 = sbr.rel (%p2105) target = $region68
        $region67: #{vae_forward.1} parent=63 // pred_region
          %s2108 = sand.u32 %s169, 1
          %s2109 = scalar_lea.sflag [#allocation4], %s2108
          %s2110 = sand.u32 %s169, 1
          %s2111 = smul.addr %s2110, 56
          %s2112 = scalar_lea.vmem [#allocation7], %s2111
          %2113 = dma.done %s2109, 896
        $region68: #{vae_forward.1} parent=63 // pred_fallthru
          _
        // Predicated region
        $region69: #{vae_forward.1} parent=63 // pred_check
          %p2114 = pneg %p210
        $region70: #{vae_forward.1} parent=63 // pred_check_branch
          %2116 = sbr.rel (%p2114) target = $region72
        $region71: #{vae_forward.1} parent=63 // pred_region
          %p2117 = scmp.lt.s32.totalorder %s25, 1
          %s2118 = scalar_select %p2117, %s25, 1
          %s2119 = smul.addr %s2118, 3
          %s2120 = smul.addr %s2119, 8
          %s2121 = scalar_lea.vmem %s7, %s2120
        $region72: #{vae_forward.1} parent=63 // pred_fallthru
          _
      $region64: #{vae_forward.1} parent=5 // pred_fallthru
        _
    $region6: #{vae_forward.1} parent=1 // loop_footer
      %s23 = sadd.s32 1, %s19
    $region7: #{vae_forward.1} parent=1 // loop_footer_branch
      %18 = sbr.rel target = $region3
    $region8: #{vae_forward.1} parent=1 // loop_exit
      _
    %2122 = vsyncpa [#allocation3], 1
    %s2123 = scalar_lea.sflag [#allocation3], 1
    %2124 = vsyncpa %s2123, 1
    %2125 = vsyncpa [#allocation6], 1
    %2126 = vsyncpa [#allocation4], 1
    %s2127 = scalar_lea.sflag [#allocation4], 1
    %2128 = vsyncpa %s2127, 1

</llo_original>
